<compile_context>
chip_gen: v6e
topology: v6e:2x2x1
jax: 0.10.0
libtpu: 0.0.40
codegen_flags: <defaults>
</compile_context>

<pallas_src>
import functools

import jax
import jax.numpy as jnp
from jax import lax
from jax.experimental import pallas as pl
from jax.experimental.pallas import tpu as pltpu


def mlp_kernel(x_ref, w1_ref, b1_ref, w2_ref, b2_ref,
               w3_ref, b3_ref, w4_ref, b4_ref, o_ref):
    # x_ref: [TB, d_in] f32; wN: [out, in] f32; bN: [out, 1] f32.
    # Layer 1: contract over d_in -> transposed activation [64, TB] (lane-dense).
    h = lax.dot_general(w1_ref[...], x_ref[...],
                        dimension_numbers=(((1,), (1,)), ((), ())),
                        preferred_element_type=jnp.float32)
    h = jnp.maximum(h + b1_ref[...], 0.0)
    # Layer 2: [32, 64] @ [64, TB] -> [32, TB]
    h = jnp.dot(w2_ref[...], h, preferred_element_type=jnp.float32)
    h = jnp.maximum(h + b2_ref[...], 0.0)
    # Layer 3: [16, 32] @ [32, TB] -> [16, TB]
    h = jnp.dot(w3_ref[...], h, preferred_element_type=jnp.float32)
    h = jnp.maximum(h + b3_ref[...], 0.0)
    # Layer 4: [out, 16] @ [16, TB] -> [out, TB] + bias, exact sigmoid (EUP tanh)
    h = jnp.dot(w4_ref[...], h, preferred_element_type=jnp.float32)
    h = h + b4_ref[...]
    o_ref[...] = (0.5 * jnp.tanh(0.5 * h) + 0.5).astype(o_ref.dtype)


def _round_up(n, m):
    return ((n + m - 1) // m) * m


# Largest batch tile: big enough to make B~1000 a single grid step, small
# enough to keep [64, tb] f32 activations within sane vreg/VMEM pressure (v5e).
_MAX_TB = 1024


def _pick_tile(batch):
    """Return (tb, b_pad): tile size and padded batch (b_pad % tb == 0)."""
    b128 = _round_up(max(batch, 1), 128)
    if b128 <= _MAX_TB:
        return b128, b128                      # one grid step (v5e/v6e sweet spot)
    # Multi-step: force an even step count so v7x's 2 TensorCores stay balanced.
    n = -(-b128 // _MAX_TB)
    if n % 2:
        n += 1
    tb = _round_up(-(-b128 // n), 128)
    return tb, n * tb


def prepare_params(params):
    """One-time prep: PyTorch-layout W [out,in] kept f32, b reshaped to [out,1]."""
    return {name: (W.astype(jnp.float32), b.reshape(-1, 1).astype(jnp.float32))
            for name, (W, b) in params.items()}


@jax.jit
def mlp_forward(x, prepped):
    """x: [B, input_dim] float32.  prepped: output of prepare_params."""
    w1, b1 = prepped["l1"]
    w2, b2 = prepped["l2"]
    w3, b3 = prepped["l3"]
    w4, b4 = prepped["l4"]
    B, d_in = x.shape
    out_dim = w4.shape[0]

    tb, b_pad = _pick_tile(B)
    grid = (b_pad // tb,)

    x_pad = jnp.pad(x.astype(jnp.float32), ((0, b_pad - B), (0, 0)))

    resident = lambda a: pl.BlockSpec(a.shape, lambda i: (0, 0))
    in_specs = [
        pl.BlockSpec((tb, d_in), lambda i: (i, 0)),   # x, tiled over batch
        resident(w1), resident(b1),
        resident(w2), resident(b2),
        resident(w3), resident(b3),
        resident(w4), resident(b4),
    ]

    outT = pl.pallas_call(
        mlp_kernel,
        out_shape=jax.ShapeDtypeStruct((out_dim, b_pad), jnp.float32),
        grid=grid,
        in_specs=in_specs,
        out_specs=pl.BlockSpec((out_dim, tb), lambda i: (0, i)),
        compiler_params=pltpu.CompilerParams(
            dimension_semantics=("parallel",)),
    )(x_pad, w1, b1, w2, b2, w3, b3, w4, b4)

    # Back to PyTorch layout [B, out_dim]; drop padded rows.
    return outT[:, :B].T


def init_params(key, input_dim, output_dim):
    """Deterministic init mirroring nn.Linear: W [out, in], b [out],
    both U(-1/sqrt(fan_in), 1/sqrt(fan_in))."""
    dims = [(input_dim, 64), (64, 32), (32, 16), (16, output_dim)]
    params = {}
    for i, (fan_in, fan_out) in enumerate(dims, start=1):
        key, kw, kb = jax.random.split(key, 3)
        bound = 1.0 / jnp.sqrt(float(fan_in))
        W = jax.random.uniform(kw, (fan_out, fan_in), jnp.float32,
                               minval=-bound, maxval=bound)
        b = jax.random.uniform(kb, (fan_out,), jnp.float32,
                               minval=-bound, maxval=bound)
        params[f"l{i}"] = (W, b)
    return params


if __name__ == "__main__":
    input_dim = 8     # Titanic-style feature count
    output_dim = 1    # survival probability
    batch = 1000      # non-multiple of 128: exercises padding; single grid step

    key = jax.random.PRNGKey(0)
    key, kx = jax.random.split(key)
    x = jax.random.normal(kx, (batch, input_dim), jnp.float32)
    params = init_params(key, input_dim, output_dim)

    prepped = prepare_params(params)   # hoisted one-time parameter prep
    out = mlp_forward(x, prepped)
    jax.block_until_ready(out)

    # Pure-JAX f32 reference (PyTorch convention: y = x @ W.T + b)
    def ref(x, params):
        h = x
        for name in ("l1", "l2", "l3"):
            W, b = params[name]
            h = jnp.maximum(h @ W.T + b, 0.0)
        W, b = params["l4"]
        return jax.nn.sigmoid(h @ W.T + b)

    r = ref(x, params)
    assert out.shape == (batch, output_dim), out.shape
    # Full-f32 path with exact sigmoid: tight tolerance.
    assert jnp.allclose(out, r, atol=1e-4, rtol=1e-4), (
        float(jnp.max(jnp.abs(out - r))))
    print("KERNEL_OK")
</pallas_src>

<mosaic_0001>
module attributes {stable_mosaic.version = 11 : i64} {
  func.func @mlp_kernel(%arg0: i32, %arg1: memref<1024x8xf32, #tpu.memory_space<vmem>>, %arg2: memref<64x8xf32, #tpu.memory_space<vmem>>, %arg3: memref<64x1xf32, #tpu.memory_space<vmem>>, %arg4: memref<32x64xf32, #tpu.memory_space<vmem>>, %arg5: memref<32x1xf32, #tpu.memory_space<vmem>>, %arg6: memref<16x32xf32, #tpu.memory_space<vmem>>, %arg7: memref<16x1xf32, #tpu.memory_space<vmem>>, %arg8: memref<1x16xf32, #tpu.memory_space<vmem>>, %arg9: memref<1x1xf32, #tpu.memory_space<vmem>>, %arg10: memref<1x1024xf32, #tpu.memory_space<vmem>>) attributes {dimension_semantics = [#tpu.dimension_semantics<parallel>], iteration_bounds = array<i64: 1>, scalar_prefetch = 0 : i64, scratch_operands = 0 : i64, tpu.core_type = #tpu.core_type<tc>, window_params = [{transform_indices = @transform_0, window_bounds = array<i64: 1024, 8>}, {pipeline_mode = #tpu.pipeline_mode<synchronous>, transform_indices = @transform_1, window_bounds = array<i64: 64, 8>}, {pipeline_mode = #tpu.pipeline_mode<synchronous>, transform_indices = @transform_2, window_bounds = array<i64: 64, 1>}, {pipeline_mode = #tpu.pipeline_mode<synchronous>, transform_indices = @transform_3, window_bounds = array<i64: 32, 64>}, {pipeline_mode = #tpu.pipeline_mode<synchronous>, transform_indices = @transform_4, window_bounds = array<i64: 32, 1>}, {pipeline_mode = #tpu.pipeline_mode<synchronous>, transform_indices = @transform_5, window_bounds = array<i64: 16, 32>}, {pipeline_mode = #tpu.pipeline_mode<synchronous>, transform_indices = @transform_6, window_bounds = array<i64: 16, 1>}, {pipeline_mode = #tpu.pipeline_mode<synchronous>, transform_indices = @transform_7, window_bounds = array<i64: 1, 16>}, {pipeline_mode = #tpu.pipeline_mode<synchronous>, transform_indices = @transform_8, window_bounds = array<i64: 1, 1>}, {transform_indices = @transform_9, window_bounds = array<i64: 1, 1024>}]} {
    %c0 = arith.constant 0 : index
    %c0_0 = arith.constant 0 : index
    %0 = vector.load %arg2[%c0, %c0_0] : memref<64x8xf32, #tpu.memory_space<vmem>>, vector<64x8xf32>
    %c0_1 = arith.constant 0 : index
    %c0_2 = arith.constant 0 : index
    %1 = vector.load %arg1[%c0_1, %c0_2] : memref<1024x8xf32, #tpu.memory_space<vmem>>, vector<1024x8xf32>
    %cst = arith.constant dense<0.000000e+00> : vector<64x1024xf32>
    %2 = tpu.matmul %0, %1, %cst {dimension_numbers = #tpu.dot_dimension_numbers<[1], [1], [0], [0], [0, 0, 1, 0], [], []>} : vector<64x8xf32>, vector<1024x8xf32>, vector<64x1024xf32> -> vector<64x1024xf32>
    %c0_3 = arith.constant 0 : index
    %c0_4 = arith.constant 0 : index
    %3 = vector.load %arg3[%c0_3, %c0_4] : memref<64x1xf32, #tpu.memory_space<vmem>>, vector<64x1xf32>
    %4 = vector.broadcast %3 : vector<64x1xf32> to vector<64x1024xf32>
    %5 = arith.addf %2, %4 : vector<64x1024xf32>
    %cst_5 = arith.constant 0.000000e+00 : f32
    %6 = vector.broadcast %cst_5 : f32 to vector<64x1024xf32>
    %7 = arith.maximumf %5, %6 : vector<64x1024xf32>
    %c0_6 = arith.constant 0 : index
    %c0_7 = arith.constant 0 : index
    %8 = vector.load %arg4[%c0_6, %c0_7] : memref<32x64xf32, #tpu.memory_space<vmem>>, vector<32x64xf32>
    %cst_8 = arith.constant dense<0.000000e+00> : vector<32x1024xf32>
    %9 = tpu.matmul %8, %7, %cst_8 {dimension_numbers = #tpu.dot_dimension_numbers<[1], [0], [0], [1], [0, 0, 1, 1], [], []>} : vector<32x64xf32>, vector<64x1024xf32>, vector<32x1024xf32> -> vector<32x1024xf32>
    %c0_9 = arith.constant 0 : index
    %c0_10 = arith.constant 0 : index
    %10 = vector.load %arg5[%c0_9, %c0_10] : memref<32x1xf32, #tpu.memory_space<vmem>>, vector<32x1xf32>
    %11 = vector.broadcast %10 : vector<32x1xf32> to vector<32x1024xf32>
    %12 = arith.addf %9, %11 : vector<32x1024xf32>
    %cst_11 = arith.constant 0.000000e+00 : f32
    %13 = vector.broadcast %cst_11 : f32 to vector<32x1024xf32>
    %14 = arith.maximumf %12, %13 : vector<32x1024xf32>
    %c0_12 = arith.constant 0 : index
    %c0_13 = arith.constant 0 : index
    %15 = vector.load %arg6[%c0_12, %c0_13] : memref<16x32xf32, #tpu.memory_space<vmem>>, vector<16x32xf32>
    %cst_14 = arith.constant dense<0.000000e+00> : vector<16x1024xf32>
    %16 = tpu.matmul %15, %14, %cst_14 {dimension_numbers = #tpu.dot_dimension_numbers<[1], [0], [0], [1], [0, 0, 1, 1], [], []>} : vector<16x32xf32>, vector<32x1024xf32>, vector<16x1024xf32> -> vector<16x1024xf32>
    %c0_15 = arith.constant 0 : index
    %c0_16 = arith.constant 0 : index
    %17 = vector.load %arg7[%c0_15, %c0_16] : memref<16x1xf32, #tpu.memory_space<vmem>>, vector<16x1xf32>
    %18 = vector.broadcast %17 : vector<16x1xf32> to vector<16x1024xf32>
    %19 = arith.addf %16, %18 : vector<16x1024xf32>
    %cst_17 = arith.constant 0.000000e+00 : f32
    %20 = vector.broadcast %cst_17 : f32 to vector<16x1024xf32>
    %21 = arith.maximumf %19, %20 : vector<16x1024xf32>
    %c0_18 = arith.constant 0 : index
    %c0_19 = arith.constant 0 : index
    %22 = vector.load %arg8[%c0_18, %c0_19] : memref<1x16xf32, #tpu.memory_space<vmem>>, vector<1x16xf32>
    %cst_20 = arith.constant dense<0.000000e+00> : vector<1x1024xf32>
    %23 = tpu.matmul %22, %21, %cst_20 {dimension_numbers = #tpu.dot_dimension_numbers<[1], [0], [0], [1], [0, 0, 1, 1], [], []>} : vector<1x16xf32>, vector<16x1024xf32>, vector<1x1024xf32> -> vector<1x1024xf32>
    %c0_21 = arith.constant 0 : index
    %c0_22 = arith.constant 0 : index
    %24 = vector.load %arg9[%c0_21, %c0_22] : memref<1x1xf32, #tpu.memory_space<vmem>>, vector<1x1xf32>
    %25 = vector.broadcast %24 : vector<1x1xf32> to vector<1x1024xf32>
    %26 = arith.addf %23, %25 : vector<1x1024xf32>
    %cst_23 = arith.constant 5.000000e-01 : f32
    %27 = vector.broadcast %cst_23 : f32 to vector<1x1024xf32>
    %28 = arith.mulf %27, %26 : vector<1x1024xf32>
    %29 = math.tanh %28 : vector<1x1024xf32>
    %cst_24 = arith.constant 5.000000e-01 : f32
    %30 = vector.broadcast %cst_24 : f32 to vector<1x1024xf32>
    %31 = arith.mulf %30, %29 : vector<1x1024xf32>
    %cst_25 = arith.constant 5.000000e-01 : f32
    %32 = vector.broadcast %cst_25 : f32 to vector<1x1024xf32>
    %33 = arith.addf %31, %32 : vector<1x1024xf32>
    %c0_26 = arith.constant 0 : index
    %c0_27 = arith.constant 0 : index
    %34 = vector.load %arg10[%c0_26, %c0_27] : memref<1x1024xf32, #tpu.memory_space<vmem>>, vector<1x1024xf32>
    tpu.vector_store %arg10[%c0_26, %c0_27], %33 {strides = array<i32>} : memref<1x1024xf32, #tpu.memory_space<vmem>>, vector<1x1024xf32>,
    return
  }
  func.func @transform_0(%arg0: i32) -> (i32, i32) {
    %c0_i32 = arith.constant 0 : i32
    %c0_i32_0 = arith.constant 0 : i32
    return %arg0, %c0_i32 : i32, i32
  }
  func.func @transform_1(%arg0: i32) -> (i32, i32) {
    %c0_i32 = arith.constant 0 : i32
    %c0_i32_0 = arith.constant 0 : i32
    %c0_i32_1 = arith.constant 0 : i32
    return %c0_i32, %c0_i32_0 : i32, i32
  }
  func.func @transform_2(%arg0: i32) -> (i32, i32) {
    %c0_i32 = arith.constant 0 : i32
    %c0_i32_0 = arith.constant 0 : i32
    %c0_i32_1 = arith.constant 0 : i32
    return %c0_i32, %c0_i32_0 : i32, i32
  }
  func.func @transform_3(%arg0: i32) -> (i32, i32) {
    %c0_i32 = arith.constant 0 : i32
    %c0_i32_0 = arith.constant 0 : i32
    %c0_i32_1 = arith.constant 0 : i32
    return %c0_i32, %c0_i32_0 : i32, i32
  }
  func.func @transform_4(%arg0: i32) -> (i32, i32) {
    %c0_i32 = arith.constant 0 : i32
    %c0_i32_0 = arith.constant 0 : i32
    %c0_i32_1 = arith.constant 0 : i32
    return %c0_i32, %c0_i32_0 : i32, i32
  }
  func.func @transform_5(%arg0: i32) -> (i32, i32) {
    %c0_i32 = arith.constant 0 : i32
    %c0_i32_0 = arith.constant 0 : i32
    %c0_i32_1 = arith.constant 0 : i32
    return %c0_i32, %c0_i32_0 : i32, i32
  }
  func.func @transform_6(%arg0: i32) -> (i32, i32) {
    %c0_i32 = arith.constant 0 : i32
    %c0_i32_0 = arith.constant 0 : i32
    %c0_i32_1 = arith.constant 0 : i32
    return %c0_i32, %c0_i32_0 : i32, i32
  }
  func.func @transform_7(%arg0: i32) -> (i32, i32) {
    %c0_i32 = arith.constant 0 : i32
    %c0_i32_0 = arith.constant 0 : i32
    %c0_i32_1 = arith.constant 0 : i32
    return %c0_i32, %c0_i32_0 : i32, i32
  }
  func.func @transform_8(%arg0: i32) -> (i32, i32) {
    %c0_i32 = arith.constant 0 : i32
    %c0_i32_0 = arith.constant 0 : i32
    %c0_i32_1 = arith.constant 0 : i32
    return %c0_i32, %c0_i32_0 : i32, i32
  }
  func.func @transform_9(%arg0: i32) -> (i32, i32) {
    %c0_i32 = arith.constant 0 : i32
    %c0_i32_0 = arith.constant 0 : i32
    return %c0_i32, %arg0 : i32, i32
  }
}

</mosaic_0001>

<llo_original>
// kernel: mlp_forward.1
$region0: #{mlp_forward.1}
  #allocation0 [shape = 'u32[]', space=smem, size = 0x4, offset = 0x4, fixed_abs, tag = 'smem constant byte address 0x4 - core index']
  #allocation1 [shape = 'u32[144,128]{1,0:T(1,128)}', space=vmem, size = 0x12000, scoped, tag = 'internal scratch']
  #allocation2 [shape = 'f32[1,1]{1,0:T(1,128)S(1)}', space=vmem, size = 0x200, scoped, tag = 'scoped memory for mlp_forward.1']
  %s0 = inlined_call_operand.vmem [shape: f32[1024,8], index: 0, kind: input, shape index: {}]
  %s1 = inlined_call_operand.vmem [shape: f32[64,8], index: 1, kind: input, shape index: {}]
  %s2 = inlined_call_operand.vmem [shape: f32[64,1], index: 2, kind: input, shape index: {}]
  %s3 = inlined_call_operand.vmem [shape: f32[32,64], index: 3, kind: input, shape index: {}]
  %s4 = inlined_call_operand.vmem [shape: f32[32,1], index: 4, kind: input, shape index: {}]
  %s5 = inlined_call_operand.vmem [shape: f32[16,32], index: 5, kind: input, shape index: {}]
  %s6 = inlined_call_operand.vmem [shape: f32[16,1], index: 6, kind: input, shape index: {}]
  %s7 = inlined_call_operand.vmem [shape: f32[1,16], index: 7, kind: input, shape index: {}]
  %s8 = inlined_call_operand.<no memory space> [shape: f32[1,1], index: 8, kind: input, shape index: {}]
  %s9 = inlined_call_operand.vmem [shape: f32[1,1024], index: 9, kind: output, shape index: {}]
  %s10 = sld [smem:[#allocation0]]
  $region46: #{mlp_forward.1} parent=0
    _
  %s12 = ssub.s32 1, %s10
  %s13 = scalar_select 0, %s12, %s10
  %v14 = vstv %s8
  %15 = vst [vmem:[#allocation2] sm:$0x1] %v14
  // Predicated region
  $region2: #{mlp_forward.1} parent=0 // pred_check
    _
  $region3: #{mlp_forward.1} parent=0 // pred_check_branch
    %17 = sbr.rel (0) target = $region5
  $region4: #{mlp_forward.1} parent=0 // pred_region
    _
  $region5: #{mlp_forward.1} parent=0 // pred_fallthru
    _
  // Predicated region
  $region6: #{mlp_forward.1} parent=0 // pred_check
    _
  $region7: #{mlp_forward.1} parent=0 // pred_check_branch
    %19 = sbr.rel (0) target = $region9
  $region8: #{mlp_forward.1} parent=0 // pred_region
    _
  $region9: #{mlp_forward.1} parent=0 // pred_fallthru
    _
  // Predicated region
  $region10: #{mlp_forward.1} parent=0 // pred_check
    _
  $region11: #{mlp_forward.1} parent=0 // pred_check_branch
    %21 = sbr.rel (0) target = $region13
  $region12: #{mlp_forward.1} parent=0 // pred_region
    _
  $region13: #{mlp_forward.1} parent=0 // pred_fallthru
    _
  // Predicated region
  $region14: #{mlp_forward.1} parent=0 // pred_check
    _
  $region15: #{mlp_forward.1} parent=0 // pred_check_branch
    %23 = sbr.rel (0) target = $region17
  $region16: #{mlp_forward.1} parent=0 // pred_region
    _
  $region17: #{mlp_forward.1} parent=0 // pred_fallthru
    _
  // Predicated region
  $region18: #{mlp_forward.1} parent=0 // pred_check
    _
  $region19: #{mlp_forward.1} parent=0 // pred_check_branch
    %25 = sbr.rel (0) target = $region21
  $region20: #{mlp_forward.1} parent=0 // pred_region
    _
  $region21: #{mlp_forward.1} parent=0 // pred_fallthru
    _
  // Predicated region
  $region22: #{mlp_forward.1} parent=0 // pred_check
    _
  $region23: #{mlp_forward.1} parent=0 // pred_check_branch
    %27 = sbr.rel (0) target = $region25
  $region24: #{mlp_forward.1} parent=0 // pred_region
    _
  $region25: #{mlp_forward.1} parent=0 // pred_fallthru
    _
  // Predicated region
  $region26: #{mlp_forward.1} parent=0 // pred_check
    _
  $region27: #{mlp_forward.1} parent=0 // pred_check_branch
    %29 = sbr.rel (0) target = $region29
  $region28: #{mlp_forward.1} parent=0 // pred_region
    _
  $region29: #{mlp_forward.1} parent=0 // pred_fallthru
    _
  // Predicated region
  $region30: #{mlp_forward.1} parent=0 // pred_check
    _
  $region31: #{mlp_forward.1} parent=0 // pred_check_branch
    %31 = sbr.rel (0) target = $region33
  $region32: #{mlp_forward.1} parent=0 // pred_region
    _
  $region33: #{mlp_forward.1} parent=0 // pred_fallthru
    _
  // Predicated region
  $region34: #{mlp_forward.1} parent=0 // pred_check
    _
  $region35: #{mlp_forward.1} parent=0 // pred_check_branch
    %33 = sbr.rel (0) target = $region37
  $region36: #{mlp_forward.1} parent=0 // pred_region
    _
  $region37: #{mlp_forward.1} parent=0 // pred_fallthru
    _
  %v34 = vld [vmem:[%s1] sm:$0xff]
  %v35 = vld [vmem:[%s1 + $0x8] sm:$0xff]
  %v36 = vld [vmem:[%s1 + $0x10] sm:$0xff]
  %v37 = vld [vmem:[%s1 + $0x18] sm:$0xff]
  %v38 = vld [vmem:[%s1 + $0x20] sm:$0xff]
  %v39 = vld [vmem:[%s1 + $0x28] sm:$0xff]
  %v40 = vld [vmem:[%s1 + $0x30] sm:$0xff]
  %v41 = vld [vmem:[%s1 + $0x38] sm:$0xff]
  %v42 = vld [vmem:[%s0] sm:$0xff]
  %v43 = vld [vmem:[%s0 + $0x8] sm:$0xff]
  %v44 = vld [vmem:[%s0 + $0x10] sm:$0xff]
  %v45 = vld [vmem:[%s0 + $0x18] sm:$0xff]
  %v46 = vld [vmem:[%s0 + $0x20] sm:$0xff]
  %v47 = vld [vmem:[%s0 + $0x28] sm:$0xff]
  %v48 = vld [vmem:[%s0 + $0x30] sm:$0xff]
  %v49 = vld [vmem:[%s0 + $0x38] sm:$0xff]
  %v50 = vld [vmem:[%s0 + $0x40] sm:$0xff]
  %v51 = vld [vmem:[%s0 + $0x48] sm:$0xff]
  %v52 = vld [vmem:[%s0 + $0x50] sm:$0xff]
  %v53 = vld [vmem:[%s0 + $0x58] sm:$0xff]
  %v54 = vld [vmem:[%s0 + $0x60] sm:$0xff]
  %v55 = vld [vmem:[%s0 + $0x68] sm:$0xff]
  %v56 = vld [vmem:[%s0 + $0x70] sm:$0xff]
  %v57 = vld [vmem:[%s0 + $0x78] sm:$0xff]
  %v58 = vld [vmem:[%s0 + $0x80] sm:$0xff]
  %v59 = vld [vmem:[%s0 + $0x88] sm:$0xff]
  %v60 = vld [vmem:[%s0 + $0x90] sm:$0xff]
  %v61 = vld [vmem:[%s0 + $0x98] sm:$0xff]
  %v62 = vld [vmem:[%s0 + $0xa0] sm:$0xff]
  %v63 = vld [vmem:[%s0 + $0xa8] sm:$0xff]
  %v64 = vld [vmem:[%s0 + $0xb0] sm:$0xff]
  %v65 = vld [vmem:[%s0 + $0xb8] sm:$0xff]
  %v66 = vld [vmem:[%s0 + $0xc0] sm:$0xff]
  %v67 = vld [vmem:[%s0 + $0xc8] sm:$0xff]
  %v68 = vld [vmem:[%s0 + $0xd0] sm:$0xff]
  %v69 = vld [vmem:[%s0 + $0xd8] sm:$0xff]
  %v70 = vld [vmem:[%s0 + $0xe0] sm:$0xff]
  %v71 = vld [vmem:[%s0 + $0xe8] sm:$0xff]
  %v72 = vld [vmem:[%s0 + $0xf0] sm:$0xff]
  %v73 = vld [vmem:[%s0 + $0xf8] sm:$0xff]
  %v74 = vld [vmem:[%s0 + $0x100] sm:$0xff]
  %v75 = vld [vmem:[%s0 + $0x108] sm:$0xff]
  %v76 = vld [vmem:[%s0 + $0x110] sm:$0xff]
  %v77 = vld [vmem:[%s0 + $0x118] sm:$0xff]
  %v78 = vld [vmem:[%s0 + $0x120] sm:$0xff]
  %v79 = vld [vmem:[%s0 + $0x128] sm:$0xff]
  %v80 = vld [vmem:[%s0 + $0x130] sm:$0xff]
  %v81 = vld [vmem:[%s0 + $0x138] sm:$0xff]
  %v82 = vld [vmem:[%s0 + $0x140] sm:$0xff]
  %v83 = vld [vmem:[%s0 + $0x148] sm:$0xff]
  %v84 = vld [vmem:[%s0 + $0x150] sm:$0xff]
  %v85 = vld [vmem:[%s0 + $0x158] sm:$0xff]
  %v86 = vld [vmem:[%s0 + $0x160] sm:$0xff]
  %v87 = vld [vmem:[%s0 + $0x168] sm:$0xff]
  %v88 = vld [vmem:[%s0 + $0x170] sm:$0xff]
  %v89 = vld [vmem:[%s0 + $0x178] sm:$0xff]
  %v90 = vld [vmem:[%s0 + $0x180] sm:$0xff]
  %v91 = vld [vmem:[%s0 + $0x188] sm:$0xff]
  %v92 = vld [vmem:[%s0 + $0x190] sm:$0xff]
  %v93 = vld [vmem:[%s0 + $0x198] sm:$0xff]
  %v94 = vld [vmem:[%s0 + $0x1a0] sm:$0xff]
  %v95 = vld [vmem:[%s0 + $0x1a8] sm:$0xff]
  %v96 = vld [vmem:[%s0 + $0x1b0] sm:$0xff]
  %v97 = vld [vmem:[%s0 + $0x1b8] sm:$0xff]
  %v98 = vld [vmem:[%s0 + $0x1c0] sm:$0xff]
  %v99 = vld [vmem:[%s0 + $0x1c8] sm:$0xff]
  %v100 = vld [vmem:[%s0 + $0x1d0] sm:$0xff]
  %v101 = vld [vmem:[%s0 + $0x1d8] sm:$0xff]
  %v102 = vld [vmem:[%s0 + $0x1e0] sm:$0xff]
  %v103 = vld [vmem:[%s0 + $0x1e8] sm:$0xff]
  %v104 = vld [vmem:[%s0 + $0x1f0] sm:$0xff]
  %v105 = vld [vmem:[%s0 + $0x1f8] sm:$0xff]
  %v106 = vld [vmem:[%s0 + $0x200] sm:$0xff]
  %v107 = vld [vmem:[%s0 + $0x208] sm:$0xff]
  %v108 = vld [vmem:[%s0 + $0x210] sm:$0xff]
  %v109 = vld [vmem:[%s0 + $0x218] sm:$0xff]
  %v110 = vld [vmem:[%s0 + $0x220] sm:$0xff]
  %v111 = vld [vmem:[%s0 + $0x228] sm:$0xff]
  %v112 = vld [vmem:[%s0 + $0x230] sm:$0xff]
  %v113 = vld [vmem:[%s0 + $0x238] sm:$0xff]
  %v114 = vld [vmem:[%s0 + $0x240] sm:$0xff]
  %v115 = vld [vmem:[%s0 + $0x248] sm:$0xff]
  %v116 = vld [vmem:[%s0 + $0x250] sm:$0xff]
  %v117 = vld [vmem:[%s0 + $0x258] sm:$0xff]
  %v118 = vld [vmem:[%s0 + $0x260] sm:$0xff]
  %v119 = vld [vmem:[%s0 + $0x268] sm:$0xff]
  %v120 = vld [vmem:[%s0 + $0x270] sm:$0xff]
  %v121 = vld [vmem:[%s0 + $0x278] sm:$0xff]
  %v122 = vld [vmem:[%s0 + $0x280] sm:$0xff]
  %v123 = vld [vmem:[%s0 + $0x288] sm:$0xff]
  %v124 = vld [vmem:[%s0 + $0x290] sm:$0xff]
  %v125 = vld [vmem:[%s0 + $0x298] sm:$0xff]
  %v126 = vld [vmem:[%s0 + $0x2a0] sm:$0xff]
  %v127 = vld [vmem:[%s0 + $0x2a8] sm:$0xff]
  %v128 = vld [vmem:[%s0 + $0x2b0] sm:$0xff]
  %v129 = vld [vmem:[%s0 + $0x2b8] sm:$0xff]
  %v130 = vld [vmem:[%s0 + $0x2c0] sm:$0xff]
  %v131 = vld [vmem:[%s0 + $0x2c8] sm:$0xff]
  %v132 = vld [vmem:[%s0 + $0x2d0] sm:$0xff]
  %v133 = vld [vmem:[%s0 + $0x2d8] sm:$0xff]
  %v134 = vld [vmem:[%s0 + $0x2e0] sm:$0xff]
  %v135 = vld [vmem:[%s0 + $0x2e8] sm:$0xff]
  %v136 = vld [vmem:[%s0 + $0x2f0] sm:$0xff]
  %v137 = vld [vmem:[%s0 + $0x2f8] sm:$0xff]
  %v138 = vld [vmem:[%s0 + $0x300] sm:$0xff]
  %v139 = vld [vmem:[%s0 + $0x308] sm:$0xff]
  %v140 = vld [vmem:[%s0 + $0x310] sm:$0xff]
  %v141 = vld [vmem:[%s0 + $0x318] sm:$0xff]
  %v142 = vld [vmem:[%s0 + $0x320] sm:$0xff]
  %v143 = vld [vmem:[%s0 + $0x328] sm:$0xff]
  %v144 = vld [vmem:[%s0 + $0x330] sm:$0xff]
  %v145 = vld [vmem:[%s0 + $0x338] sm:$0xff]
  %v146 = vld [vmem:[%s0 + $0x340] sm:$0xff]
  %v147 = vld [vmem:[%s0 + $0x348] sm:$0xff]
  %v148 = vld [vmem:[%s0 + $0x350] sm:$0xff]
  %v149 = vld [vmem:[%s0 + $0x358] sm:$0xff]
  %v150 = vld [vmem:[%s0 + $0x360] sm:$0xff]
  %v151 = vld [vmem:[%s0 + $0x368] sm:$0xff]
  %v152 = vld [vmem:[%s0 + $0x370] sm:$0xff]
  %v153 = vld [vmem:[%s0 + $0x378] sm:$0xff]
  %v154 = vld [vmem:[%s0 + $0x380] sm:$0xff]
  %v155 = vld [vmem:[%s0 + $0x388] sm:$0xff]
  %v156 = vld [vmem:[%s0 + $0x390] sm:$0xff]
  %v157 = vld [vmem:[%s0 + $0x398] sm:$0xff]
  %v158 = vld [vmem:[%s0 + $0x3a0] sm:$0xff]
  %v159 = vld [vmem:[%s0 + $0x3a8] sm:$0xff]
  %v160 = vld [vmem:[%s0 + $0x3b0] sm:$0xff]
  %v161 = vld [vmem:[%s0 + $0x3b8] sm:$0xff]
  %v162 = vld [vmem:[%s0 + $0x3c0] sm:$0xff]
  %v163 = vld [vmem:[%s0 + $0x3c8] sm:$0xff]
  %v164 = vld [vmem:[%s0 + $0x3d0] sm:$0xff]
  %v165 = vld [vmem:[%s0 + $0x3d8] sm:$0xff]
  %v166 = vld [vmem:[%s0 + $0x3e0] sm:$0xff]
  %v167 = vld [vmem:[%s0 + $0x3e8] sm:$0xff]
  %v168 = vld [vmem:[%s0 + $0x3f0] sm:$0xff]
  %v169 = vld [vmem:[%s0 + $0x3f8] sm:$0xff]
  %v170 = vld [vmem:[%s2] sm:$0xff]
  %v171 = vld [vmem:[%s2 + $0x8] sm:$0xff]
  %v172 = vld [vmem:[%s2 + $0x10] sm:$0xff]
  %v173 = vld [vmem:[%s2 + $0x18] sm:$0xff]
  %v174 = vld [vmem:[%s2 + $0x20] sm:$0xff]
  %v175 = vld [vmem:[%s2 + $0x28] sm:$0xff]
  %v176 = vld [vmem:[%s2 + $0x30] sm:$0xff]
  %v177 = vld [vmem:[%s2 + $0x38] sm:$0xff]
  %179 = vset.pattern.permute.xlu0 0
  %180 = vperm.xlu0 %179, %v170
  %v181 = vpop.permute.xlu0 %180
  %184 = vset.pattern.permute.xlu0 0
  %185 = vperm.xlu0 %184, %v171
  %v186 = vpop.permute.xlu0 %185
  %189 = vset.pattern.permute.xlu0 0
  %190 = vperm.xlu0 %189, %v172
  %v191 = vpop.permute.xlu0 %190
  %194 = vset.pattern.permute.xlu0 0
  %195 = vperm.xlu0 %194, %v173
  %v196 = vpop.permute.xlu0 %195
  %199 = vset.pattern.permute.xlu0 0
  %200 = vperm.xlu0 %199, %v174
  %v201 = vpop.permute.xlu0 %200
  %204 = vset.pattern.permute.xlu0 0
  %205 = vperm.xlu0 %204, %v175
  %v206 = vpop.permute.xlu0 %205
  %209 = vset.pattern.permute.xlu0 0
  %210 = vperm.xlu0 %209, %v176
  %v211 = vpop.permute.xlu0 %210
  %214 = vset.pattern.permute.xlu0 0
  %215 = vperm.xlu0 %214, %v177
  %v216 = vpop.permute.xlu0 %215
  %vm218 = vcmask 64512
  %v220 = vsel %vm218, %v34, 0
  %v223 = vsel %vm218, %v35, 0
  %v226 = vsel %vm218, %v36, 0
  %v229 = vsel %vm218, %v37, 0
  %v232 = vsel %vm218, %v38, 0
  %v235 = vsel %vm218, %v39, 0
  %v238 = vsel %vm218, %v40, 0
  %v241 = vsel %vm218, %v41, 0
  %v244 = vsel %vm218, %v42, 0
  %v247 = vsel %vm218, %v43, 0
  %v250 = vsel %vm218, %v44, 0
  %v253 = vsel %vm218, %v45, 0
  %v256 = vsel %vm218, %v46, 0
  %v259 = vsel %vm218, %v47, 0
  %v262 = vsel %vm218, %v48, 0
  %v265 = vsel %vm218, %v49, 0
  %v268 = vsel %vm218, %v50, 0
  %v271 = vsel %vm218, %v51, 0
  %v274 = vsel %vm218, %v52, 0
  %v277 = vsel %vm218, %v53, 0
  %v280 = vsel %vm218, %v54, 0
  %v283 = vsel %vm218, %v55, 0
  %v286 = vsel %vm218, %v56, 0
  %v289 = vsel %vm218, %v57, 0
  %v292 = vsel %vm218, %v58, 0
  %v295 = vsel %vm218, %v59, 0
  %v298 = vsel %vm218, %v60, 0
  %v301 = vsel %vm218, %v61, 0
  %v304 = vsel %vm218, %v62, 0
  %v307 = vsel %vm218, %v63, 0
  %v310 = vsel %vm218, %v64, 0
  %v313 = vsel %vm218, %v65, 0
  %v316 = vsel %vm218, %v66, 0
  %v319 = vsel %vm218, %v67, 0
  %v322 = vsel %vm218, %v68, 0
  %v325 = vsel %vm218, %v69, 0
  %v328 = vsel %vm218, %v70, 0
  %v331 = vsel %vm218, %v71, 0
  %v334 = vsel %vm218, %v72, 0
  %v337 = vsel %vm218, %v73, 0
  %v340 = vsel %vm218, %v74, 0
  %v343 = vsel %vm218, %v75, 0
  %v346 = vsel %vm218, %v76, 0
  %v349 = vsel %vm218, %v77, 0
  %v352 = vsel %vm218, %v78, 0
  %v355 = vsel %vm218, %v79, 0
  %v358 = vsel %vm218, %v80, 0
  %v361 = vsel %vm218, %v81, 0
  %v364 = vsel %vm218, %v82, 0
  %v367 = vsel %vm218, %v83, 0
  %v370 = vsel %vm218, %v84, 0
  %v373 = vsel %vm218, %v85, 0
  %v376 = vsel %vm218, %v86, 0
  %v379 = vsel %vm218, %v87, 0
  %v382 = vsel %vm218, %v88, 0
  %v385 = vsel %vm218, %v89, 0
  %v388 = vsel %vm218, %v90, 0
  %v391 = vsel %vm218, %v91, 0
  %v394 = vsel %vm218, %v92, 0
  %v397 = vsel %vm218, %v93, 0
  %v400 = vsel %vm218, %v94, 0
  %v403 = vsel %vm218, %v95, 0
  %v406 = vsel %vm218, %v96, 0
  %v409 = vsel %vm218, %v97, 0
  %v412 = vsel %vm218, %v98, 0
  %v415 = vsel %vm218, %v99, 0
  %v418 = vsel %vm218, %v100, 0
  %v421 = vsel %vm218, %v101, 0
  %v424 = vsel %vm218, %v102, 0
  %v427 = vsel %vm218, %v103, 0
  %v430 = vsel %vm218, %v104, 0
  %v433 = vsel %vm218, %v105, 0
  %v436 = vsel %vm218, %v106, 0
  %v439 = vsel %vm218, %v107, 0
  %v442 = vsel %vm218, %v108, 0
  %v445 = vsel %vm218, %v109, 0
  %v448 = vsel %vm218, %v110, 0
  %v451 = vsel %vm218, %v111, 0
  %v454 = vsel %vm218, %v112, 0
  %v457 = vsel %vm218, %v113, 0
  %v460 = vsel %vm218, %v114, 0
  %v463 = vsel %vm218, %v115, 0
  %v466 = vsel %vm218, %v116, 0
  %v469 = vsel %vm218, %v117, 0
  %v472 = vsel %vm218, %v118, 0
  %v475 = vsel %vm218, %v119, 0
  %v478 = vsel %vm218, %v120, 0
  %v481 = vsel %vm218, %v121, 0
  %v484 = vsel %vm218, %v122, 0
  %v487 = vsel %vm218, %v123, 0
  %v490 = vsel %vm218, %v124, 0
  %v493 = vsel %vm218, %v125, 0
  %v496 = vsel %vm218, %v126, 0
  %v499 = vsel %vm218, %v127, 0
  %v502 = vsel %vm218, %v128, 0
  %v505 = vsel %vm218, %v129, 0
  %v508 = vsel %vm218, %v130, 0
  %v511 = vsel %vm218, %v131, 0
  %v514 = vsel %vm218, %v132, 0
  %v517 = vsel %vm218, %v133, 0
  %v520 = vsel %vm218, %v134, 0
  %v523 = vsel %vm218, %v135, 0
  %v526 = vsel %vm218, %v136, 0
  %v529 = vsel %vm218, %v137, 0
  %v532 = vsel %vm218, %v138, 0
  %v535 = vsel %vm218, %v139, 0
  %v538 = vsel %vm218, %v140, 0
  %v541 = vsel %vm218, %v141, 0
  %v544 = vsel %vm218, %v142, 0
  %v547 = vsel %vm218, %v143, 0
  %v550 = vsel %vm218, %v144, 0
  %v553 = vsel %vm218, %v145, 0
  %v556 = vsel %vm218, %v146, 0
  %v559 = vsel %vm218, %v147, 0
  %v562 = vsel %vm218, %v148, 0
  %v565 = vsel %vm218, %v149, 0
  %v568 = vsel %vm218, %v150, 0
  %v571 = vsel %vm218, %v151, 0
  %v574 = vsel %vm218, %v152, 0
  %v577 = vsel %vm218, %v153, 0
  %v580 = vsel %vm218, %v154, 0
  %v583 = vsel %vm218, %v155, 0
  %v586 = vsel %vm218, %v156, 0
  %v589 = vsel %vm218, %v157, 0
  %v592 = vsel %vm218, %v158, 0
  %v595 = vsel %vm218, %v159, 0
  %v598 = vsel %vm218, %v160, 0
  %v601 = vsel %vm218, %v161, 0
  %v604 = vsel %vm218, %v162, 0
  %v607 = vsel %vm218, %v163, 0
  %v610 = vsel %vm218, %v164, 0
  %v613 = vsel %vm218, %v165, 0
  %v616 = vsel %vm218, %v166, 0
  %v619 = vsel %vm218, %v167, 0
  %v622 = vsel %vm218, %v168, 0
  %v625 = vsel %vm218, %v169, 0
  %627 = vmatprep.subr.mxu0 0.0
  %628 = vmatpush1.xpose.msra.mxu0 %v289
  %629 = vmatprep.subr.mxu0 0.0
  %630 = vmatpush1.xpose.msra.mxu0 %v286
  %631 = vmatprep.subr.mxu0 0.0
  %632 = vmatpush1.xpose.msra.mxu0 %v283
  %633 = vmatprep.subr.mxu0 0.0
  %634 = vmatpush1.xpose.msra.mxu0 %v280
  %635 = vmatprep.subr.mxu0 0.0
  %636 = vmatpush1.xpose.msra.mxu0 %v277
  %637 = vmatprep.subr.mxu0 0.0
  %638 = vmatpush1.xpose.msra.mxu0 %v274
  %639 = vmatprep.subr.mxu0 0.0
  %640 = vmatpush1.xpose.msra.mxu0 %v271
  %641 = vmatprep.subr.mxu0 0.0
  %642 = vmatpush1.xpose.msra.mxu0 %v268
  %643 = vmatprep.subr.mxu0 0.0
  %644 = vmatpush1.xpose.msra.mxu0 %v265
  %645 = vmatprep.subr.mxu0 0.0
  %646 = vmatpush1.xpose.msra.mxu0 %v262
  %647 = vmatprep.subr.mxu0 0.0
  %648 = vmatpush1.xpose.msra.mxu0 %v259
  %649 = vmatprep.subr.mxu0 0.0
  %650 = vmatpush1.xpose.msra.mxu0 %v256
  %651 = vmatprep.subr.mxu0 0.0
  %652 = vmatpush1.xpose.msra.mxu0 %v253
  %653 = vmatprep.subr.mxu0 0.0
  %654 = vmatpush1.xpose.msra.mxu0 %v250
  %655 = vmatprep.subr.mxu0 0.0
  %656 = vmatpush1.xpose.msra.mxu0 %v247
  %657 = vmatprep.subr.mxu0 0.0
  %658 = vmatpush1.xpose.msra.mxu0 %v244
  %659 = vmatprep.subr.mxu0 0.0
  %660 = vmatpush2.xpose.msra.mxu0 %v337
  %661 = vmatprep.subr.mxu0 0.0
  %662 = vmatpush2.xpose.msra.mxu0 %v334
  %663 = vmatprep.subr.mxu0 0.0
  %664 = vmatpush2.xpose.msra.mxu0 %v331
  %665 = vmatprep.subr.mxu0 0.0
  %666 = vmatpush2.xpose.msra.mxu0 %v328
  %667 = vmatprep.subr.mxu0 0.0
  %668 = vmatpush2.xpose.msra.mxu0 %v325
  %669 = vmatprep.subr.mxu0 0.0
  %670 = vmatpush2.xpose.msra.mxu0 %v322
  %671 = vmatprep.subr.mxu0 0.0
  %672 = vmatpush2.xpose.msra.mxu0 %v319
  %673 = vmatprep.subr.mxu0 0.0
  %674 = vmatpush2.xpose.msra.mxu0 %v316
  %675 = vmatprep.subr.mxu0 0.0
  %676 = vmatpush2.xpose.msra.mxu0 %v313
  %677 = vmatprep.subr.mxu0 0.0
  %678 = vmatpush2.xpose.msra.mxu0 %v310
  %679 = vmatprep.subr.mxu0 0.0
  %680 = vmatpush2.xpose.msra.mxu0 %v307
  %681 = vmatprep.subr.mxu0 0.0
  %682 = vmatpush2.xpose.msra.mxu0 %v304
  %683 = vmatprep.subr.mxu0 0.0
  %684 = vmatpush2.xpose.msra.mxu0 %v301
  %685 = vmatprep.subr.mxu0 0.0
  %686 = vmatpush2.xpose.msra.mxu0 %v298
  %687 = vmatprep.subr.mxu0 0.0
  %688 = vmatpush2.xpose.msra.mxu0 %v295
  %689 = vmatprep.subr.mxu0 0.0
  %690 = vmatpush2.xpose.msra.mxu0 %v292
  %691 = vmatprep.mubr.f32.mxu0 0.0
  %692 = vmatmul.mubr.f32.gmra.mxu0 %v220
  %v693 = vpop.f32.mrf.mxu0
  %v694 = vadd.f32 %v181, %v693
  %v695 = vpop.f32.mrf.mxu0
  %v696 = vadd.f32 %v181, %v695
  %697 = vmatprep.mubr.f32.mxu0 0.0
  %698 = vmatmul.mubr.f32.gmra.mxu0 %v223
  %v699 = vpop.f32.mrf.mxu0
  %v700 = vadd.f32 %v186, %v699
  %v701 = vpop.f32.mrf.mxu0
  %v702 = vadd.f32 %v186, %v701
  %703 = vmatprep.mubr.f32.mxu0 0.0
  %704 = vmatmul.mubr.f32.gmra.mxu0 %v226
  %v705 = vpop.f32.mrf.mxu0
  %v706 = vadd.f32 %v191, %v705
  %v707 = vpop.f32.mrf.mxu0
  %v708 = vadd.f32 %v191, %v707
  %709 = vmatprep.mubr.f32.mxu0 0.0
  %710 = vmatmul.mubr.f32.gmra.mxu0 %v229
  %v711 = vpop.f32.mrf.mxu0
  %v712 = vadd.f32 %v196, %v711
  %v713 = vpop.f32.mrf.mxu0
  %v714 = vadd.f32 %v196, %v713
  %715 = vmatprep.mubr.f32.mxu0 0.0
  %716 = vmatmul.mubr.f32.gmra.mxu0 %v232
  %v717 = vpop.f32.mrf.mxu0
  %v718 = vadd.f32 %v201, %v717
  %v719 = vpop.f32.mrf.mxu0
  %v720 = vadd.f32 %v201, %v719
  %721 = vmatprep.mubr.f32.mxu0 0.0
  %722 = vmatmul.mubr.f32.gmra.mxu0 %v235
  %v723 = vpop.f32.mrf.mxu0
  %v724 = vadd.f32 %v206, %v723
  %v725 = vpop.f32.mrf.mxu0
  %v726 = vadd.f32 %v206, %v725
  %727 = vmatprep.mubr.f32.mxu0 0.0
  %728 = vmatmul.mubr.f32.gmra.mxu0 %v238
  %v729 = vpop.f32.mrf.mxu0
  %v730 = vadd.f32 %v211, %v729
  %v731 = vpop.f32.mrf.mxu0
  %v732 = vadd.f32 %v211, %v731
  %733 = vmatprep.mubr.f32.mxu0 0.0
  %734 = vmatmul.mubr.f32.gmra.mxu0 %v241
  %v735 = vpop.f32.mrf.mxu0
  %v736 = vadd.f32 %v216, %v735
  %v737 = vpop.f32.mrf.mxu0
  %v738 = vadd.f32 %v216, %v737
  %739 = vdwg.mxu0
  %740 = vmatprep.subr.mxu0 0.0
  %741 = vmatpush1.xpose.msra.mxu0 %v385
  %742 = vmatprep.subr.mxu0 0.0
  %743 = vmatpush1.xpose.msra.mxu0 %v382
  %744 = vmatprep.subr.mxu0 0.0
  %745 = vmatpush1.xpose.msra.mxu0 %v379
  %746 = vmatprep.subr.mxu0 0.0
  %747 = vmatpush1.xpose.msra.mxu0 %v376
  %748 = vmatprep.subr.mxu0 0.0
  %749 = vmatpush1.xpose.msra.mxu0 %v373
  %750 = vmatprep.subr.mxu0 0.0
  %751 = vmatpush1.xpose.msra.mxu0 %v370
  %752 = vmatprep.subr.mxu0 0.0
  %753 = vmatpush1.xpose.msra.mxu0 %v367
  %754 = vmatprep.subr.mxu0 0.0
  %755 = vmatpush1.xpose.msra.mxu0 %v364
  %756 = vmatprep.subr.mxu0 0.0
  %757 = vmatpush1.xpose.msra.mxu0 %v361
  %758 = vmatprep.subr.mxu0 0.0
  %759 = vmatpush1.xpose.msra.mxu0 %v358
  %760 = vmatprep.subr.mxu0 0.0
  %761 = vmatpush1.xpose.msra.mxu0 %v355
  %762 = vmatprep.subr.mxu0 0.0
  %763 = vmatpush1.xpose.msra.mxu0 %v352
  %764 = vmatprep.subr.mxu0 0.0
  %765 = vmatpush1.xpose.msra.mxu0 %v349
  %766 = vmatprep.subr.mxu0 0.0
  %767 = vmatpush1.xpose.msra.mxu0 %v346
  %768 = vmatprep.subr.mxu0 0.0
  %769 = vmatpush1.xpose.msra.mxu0 %v343
  %770 = vmatprep.subr.mxu0 0.0
  %771 = vmatpush1.xpose.msra.mxu0 %v340
  %772 = vmatprep.subr.mxu0 0.0
  %773 = vmatpush2.xpose.msra.mxu0 %v433
  %774 = vmatprep.subr.mxu0 0.0
  %775 = vmatpush2.xpose.msra.mxu0 %v430
  %776 = vmatprep.subr.mxu0 0.0
  %777 = vmatpush2.xpose.msra.mxu0 %v427
  %778 = vmatprep.subr.mxu0 0.0
  %779 = vmatpush2.xpose.msra.mxu0 %v424
  %780 = vmatprep.subr.mxu0 0.0
  %781 = vmatpush2.xpose.msra.mxu0 %v421
  %782 = vmatprep.subr.mxu0 0.0
  %783 = vmatpush2.xpose.msra.mxu0 %v418
  %784 = vmatprep.subr.mxu0 0.0
  %785 = vmatpush2.xpose.msra.mxu0 %v415
  %786 = vmatprep.subr.mxu0 0.0
  %787 = vmatpush2.xpose.msra.mxu0 %v412
  %788 = vmatprep.subr.mxu0 0.0
  %789 = vmatpush2.xpose.msra.mxu0 %v409
  %790 = vmatprep.subr.mxu0 0.0
  %791 = vmatpush2.xpose.msra.mxu0 %v406
  %792 = vmatprep.subr.mxu0 0.0
  %793 = vmatpush2.xpose.msra.mxu0 %v403
  %794 = vmatprep.subr.mxu0 0.0
  %795 = vmatpush2.xpose.msra.mxu0 %v400
  %796 = vmatprep.subr.mxu0 0.0
  %797 = vmatpush2.xpose.msra.mxu0 %v397
  %798 = vmatprep.subr.mxu0 0.0
  %799 = vmatpush2.xpose.msra.mxu0 %v394
  %800 = vmatprep.subr.mxu0 0.0
  %801 = vmatpush2.xpose.msra.mxu0 %v391
  %802 = vmatprep.subr.mxu0 0.0
  %803 = vmatpush2.xpose.msra.mxu0 %v388
  %804 = vmatprep.mubr.f32.mxu0 0.0
  %805 = vmatmul.mubr.f32.gmra.mxu0 %v220
  %v806 = vpop.f32.mrf.mxu0
  %v807 = vadd.f32 %v181, %v806
  %v808 = vpop.f32.mrf.mxu0
  %v809 = vadd.f32 %v181, %v808
  %810 = vmatprep.mubr.f32.mxu0 0.0
  %811 = vmatmul.mubr.f32.gmra.mxu0 %v223
  %v812 = vpop.f32.mrf.mxu0
  %v813 = vadd.f32 %v186, %v812
  %v814 = vpop.f32.mrf.mxu0
  %v815 = vadd.f32 %v186, %v814
  %816 = vmatprep.mubr.f32.mxu0 0.0
  %817 = vmatmul.mubr.f32.gmra.mxu0 %v226
  %v818 = vpop.f32.mrf.mxu0
  %v819 = vadd.f32 %v191, %v818
  %v820 = vpop.f32.mrf.mxu0
  %v821 = vadd.f32 %v191, %v820
  %822 = vmatprep.mubr.f32.mxu0 0.0
  %823 = vmatmul.mubr.f32.gmra.mxu0 %v229
  %v824 = vpop.f32.mrf.mxu0
  %v825 = vadd.f32 %v196, %v824
  %v826 = vpop.f32.mrf.mxu0
  %v827 = vadd.f32 %v196, %v826
  %828 = vmatprep.mubr.f32.mxu0 0.0
  %829 = vmatmul.mubr.f32.gmra.mxu0 %v232
  %v830 = vpop.f32.mrf.mxu0
  %v831 = vadd.f32 %v201, %v830
  %v832 = vpop.f32.mrf.mxu0
  %v833 = vadd.f32 %v201, %v832
  %834 = vmatprep.mubr.f32.mxu0 0.0
  %835 = vmatmul.mubr.f32.gmra.mxu0 %v235
  %v836 = vpop.f32.mrf.mxu0
  %v837 = vadd.f32 %v206, %v836
  %v838 = vpop.f32.mrf.mxu0
  %v839 = vadd.f32 %v206, %v838
  %840 = vmatprep.mubr.f32.mxu0 0.0
  %841 = vmatmul.mubr.f32.gmra.mxu0 %v238
  %v842 = vpop.f32.mrf.mxu0
  %v843 = vadd.f32 %v211, %v842
  %v844 = vpop.f32.mrf.mxu0
  %v845 = vadd.f32 %v211, %v844
  %846 = vmatprep.mubr.f32.mxu0 0.0
  %847 = vmatmul.mubr.f32.gmra.mxu0 %v241
  %v848 = vpop.f32.mrf.mxu0
  %v849 = vadd.f32 %v216, %v848
  %v850 = vpop.f32.mrf.mxu0
  %v851 = vadd.f32 %v216, %v850
  %852 = vdwg.mxu0
  %853 = vmatprep.subr.mxu0 0.0
  %854 = vmatpush1.xpose.msra.mxu0 %v481
  %855 = vmatprep.subr.mxu0 0.0
  %856 = vmatpush1.xpose.msra.mxu0 %v478
  %857 = vmatprep.subr.mxu0 0.0
  %858 = vmatpush1.xpose.msra.mxu0 %v475
  %859 = vmatprep.subr.mxu0 0.0
  %860 = vmatpush1.xpose.msra.mxu0 %v472
  %861 = vmatprep.subr.mxu0 0.0
  %862 = vmatpush1.xpose.msra.mxu0 %v469
  %863 = vmatprep.subr.mxu0 0.0
  %864 = vmatpush1.xpose.msra.mxu0 %v466
  %865 = vmatprep.subr.mxu0 0.0
  %866 = vmatpush1.xpose.msra.mxu0 %v463
  %867 = vmatprep.subr.mxu0 0.0
  %868 = vmatpush1.xpose.msra.mxu0 %v460
  %869 = vmatprep.subr.mxu0 0.0
  %870 = vmatpush1.xpose.msra.mxu0 %v457
  %871 = vmatprep.subr.mxu0 0.0
  %872 = vmatpush1.xpose.msra.mxu0 %v454
  %873 = vmatprep.subr.mxu0 0.0
  %874 = vmatpush1.xpose.msra.mxu0 %v451
  %875 = vmatprep.subr.mxu0 0.0
  %876 = vmatpush1.xpose.msra.mxu0 %v448
  %877 = vmatprep.subr.mxu0 0.0
  %878 = vmatpush1.xpose.msra.mxu0 %v445
  %879 = vmatprep.subr.mxu0 0.0
  %880 = vmatpush1.xpose.msra.mxu0 %v442
  %881 = vmatprep.subr.mxu0 0.0
  %882 = vmatpush1.xpose.msra.mxu0 %v439
  %883 = vmatprep.subr.mxu0 0.0
  %884 = vmatpush1.xpose.msra.mxu0 %v436
  %885 = vmatprep.subr.mxu0 0.0
  %886 = vmatpush2.xpose.msra.mxu0 %v529
  %887 = vmatprep.subr.mxu0 0.0
  %888 = vmatpush2.xpose.msra.mxu0 %v526
  %889 = vmatprep.subr.mxu0 0.0
  %890 = vmatpush2.xpose.msra.mxu0 %v523
  %891 = vmatprep.subr.mxu0 0.0
  %892 = vmatpush2.xpose.msra.mxu0 %v520
  %893 = vmatprep.subr.mxu0 0.0
  %894 = vmatpush2.xpose.msra.mxu0 %v517
  %895 = vmatprep.subr.mxu0 0.0
  %896 = vmatpush2.xpose.msra.mxu0 %v514
  %897 = vmatprep.subr.mxu0 0.0
  %898 = vmatpush2.xpose.msra.mxu0 %v511
  %899 = vmatprep.subr.mxu0 0.0
  %900 = vmatpush2.xpose.msra.mxu0 %v508
  %901 = vmatprep.subr.mxu0 0.0
  %902 = vmatpush2.xpose.msra.mxu0 %v505
  %903 = vmatprep.subr.mxu0 0.0
  %904 = vmatpush2.xpose.msra.mxu0 %v502
  %905 = vmatprep.subr.mxu0 0.0
  %906 = vmatpush2.xpose.msra.mxu0 %v499
  %907 = vmatprep.subr.mxu0 0.0
  %908 = vmatpush2.xpose.msra.mxu0 %v496
  %909 = vmatprep.subr.mxu0 0.0
  %910 = vmatpush2.xpose.msra.mxu0 %v493
  %911 = vmatprep.subr.mxu0 0.0
  %912 = vmatpush2.xpose.msra.mxu0 %v490
  %913 = vmatprep.subr.mxu0 0.0
  %914 = vmatpush2.xpose.msra.mxu0 %v487
  %915 = vmatprep.subr.mxu0 0.0
  %916 = vmatpush2.xpose.msra.mxu0 %v484
  %917 = vmatprep.mubr.f32.mxu0 0.0
  %918 = vmatmul.mubr.f32.gmra.mxu0 %v220
  %v919 = vpop.f32.mrf.mxu0
  %v920 = vadd.f32 %v181, %v919
  %v921 = vpop.f32.mrf.mxu0
  %v922 = vadd.f32 %v181, %v921
  %923 = vmatprep.mubr.f32.mxu0 0.0
  %924 = vmatmul.mubr.f32.gmra.mxu0 %v223
  %v925 = vpop.f32.mrf.mxu0
  %v926 = vadd.f32 %v186, %v925
  %v927 = vpop.f32.mrf.mxu0
  %v928 = vadd.f32 %v186, %v927
  %929 = vmatprep.mubr.f32.mxu0 0.0
  %930 = vmatmul.mubr.f32.gmra.mxu0 %v226
  %v931 = vpop.f32.mrf.mxu0
  %v932 = vadd.f32 %v191, %v931
  %v933 = vpop.f32.mrf.mxu0
  %v934 = vadd.f32 %v191, %v933
  %935 = vmatprep.mubr.f32.mxu0 0.0
  %936 = vmatmul.mubr.f32.gmra.mxu0 %v229
  %v937 = vpop.f32.mrf.mxu0
  %v938 = vadd.f32 %v196, %v937
  %v939 = vpop.f32.mrf.mxu0
  %v940 = vadd.f32 %v196, %v939
  %941 = vmatprep.mubr.f32.mxu0 0.0
  %942 = vmatmul.mubr.f32.gmra.mxu0 %v232
  %v943 = vpop.f32.mrf.mxu0
  %v944 = vadd.f32 %v201, %v943
  %v945 = vpop.f32.mrf.mxu0
  %v946 = vadd.f32 %v201, %v945
  %947 = vmatprep.mubr.f32.mxu0 0.0
  %948 = vmatmul.mubr.f32.gmra.mxu0 %v235
  %v949 = vpop.f32.mrf.mxu0
  %v950 = vadd.f32 %v206, %v949
  %v951 = vpop.f32.mrf.mxu0
  %v952 = vadd.f32 %v206, %v951
  %953 = vmatprep.mubr.f32.mxu0 0.0
  %954 = vmatmul.mubr.f32.gmra.mxu0 %v238
  %v955 = vpop.f32.mrf.mxu0
  %v956 = vadd.f32 %v211, %v955
  %v957 = vpop.f32.mrf.mxu0
  %v958 = vadd.f32 %v211, %v957
  %959 = vmatprep.mubr.f32.mxu0 0.0
  %960 = vmatmul.mubr.f32.gmra.mxu0 %v241
  %v961 = vpop.f32.mrf.mxu0
  %v962 = vadd.f32 %v216, %v961
  %v963 = vpop.f32.mrf.mxu0
  %v964 = vadd.f32 %v216, %v963
  %965 = vdwg.mxu0
  %966 = vmatprep.subr.mxu0 0.0
  %967 = vmatpush1.xpose.msra.mxu0 %v577
  %968 = vmatprep.subr.mxu0 0.0
  %969 = vmatpush1.xpose.msra.mxu0 %v574
  %970 = vmatprep.subr.mxu0 0.0
  %971 = vmatpush1.xpose.msra.mxu0 %v571
  %972 = vmatprep.subr.mxu0 0.0
  %973 = vmatpush1.xpose.msra.mxu0 %v568
  %974 = vmatprep.subr.mxu0 0.0
  %975 = vmatpush1.xpose.msra.mxu0 %v565
  %976 = vmatprep.subr.mxu0 0.0
  %977 = vmatpush1.xpose.msra.mxu0 %v562
  %978 = vmatprep.subr.mxu0 0.0
  %979 = vmatpush1.xpose.msra.mxu0 %v559
  %980 = vmatprep.subr.mxu0 0.0
  %981 = vmatpush1.xpose.msra.mxu0 %v556
  %982 = vmatprep.subr.mxu0 0.0
  %983 = vmatpush1.xpose.msra.mxu0 %v553
  %984 = vmatprep.subr.mxu0 0.0
  %985 = vmatpush1.xpose.msra.mxu0 %v550
  %986 = vmatprep.subr.mxu0 0.0
  %987 = vmatpush1.xpose.msra.mxu0 %v547
  %988 = vmatprep.subr.mxu0 0.0
  %989 = vmatpush1.xpose.msra.mxu0 %v544
  %990 = vmatprep.subr.mxu0 0.0
  %991 = vmatpush1.xpose.msra.mxu0 %v541
  %992 = vmatprep.subr.mxu0 0.0
  %993 = vmatpush1.xpose.msra.mxu0 %v538
  %994 = vmatprep.subr.mxu0 0.0
  %995 = vmatpush1.xpose.msra.mxu0 %v535
  %996 = vmatprep.subr.mxu0 0.0
  %997 = vmatpush1.xpose.msra.mxu0 %v532
  %998 = vmatprep.subr.mxu0 0.0
  %999 = vmatpush2.xpose.msra.mxu0 %v625
  %1000 = vmatprep.subr.mxu0 0.0
  %1001 = vmatpush2.xpose.msra.mxu0 %v622
  %1002 = vmatprep.subr.mxu0 0.0
  %1003 = vmatpush2.xpose.msra.mxu0 %v619
  %1004 = vmatprep.subr.mxu0 0.0
  %1005 = vmatpush2.xpose.msra.mxu0 %v616
  %1006 = vmatprep.subr.mxu0 0.0
  %1007 = vmatpush2.xpose.msra.mxu0 %v613
  %1008 = vmatprep.subr.mxu0 0.0
  %1009 = vmatpush2.xpose.msra.mxu0 %v610
  %1010 = vmatprep.subr.mxu0 0.0
  %1011 = vmatpush2.xpose.msra.mxu0 %v607
  %1012 = vmatprep.subr.mxu0 0.0
  %1013 = vmatpush2.xpose.msra.mxu0 %v604
  %1014 = vmatprep.subr.mxu0 0.0
  %1015 = vmatpush2.xpose.msra.mxu0 %v601
  %1016 = vmatprep.subr.mxu0 0.0
  %1017 = vmatpush2.xpose.msra.mxu0 %v598
  %1018 = vmatprep.subr.mxu0 0.0
  %1019 = vmatpush2.xpose.msra.mxu0 %v595
  %1020 = vmatprep.subr.mxu0 0.0
  %1021 = vmatpush2.xpose.msra.mxu0 %v592
  %1022 = vmatprep.subr.mxu0 0.0
  %1023 = vmatpush2.xpose.msra.mxu0 %v589
  %1024 = vmatprep.subr.mxu0 0.0
  %1025 = vmatpush2.xpose.msra.mxu0 %v586
  %1026 = vmatprep.subr.mxu0 0.0
  %1027 = vmatpush2.xpose.msra.mxu0 %v583
  %1028 = vmatprep.subr.mxu0 0.0
  %1029 = vmatpush2.xpose.msra.mxu0 %v580
  %1030 = vmatprep.mubr.f32.mxu0 0.0
  %1031 = vmatmul.mubr.f32.gmra.mxu0 %v220
  %v1032 = vpop.f32.mrf.mxu0
  %v1033 = vadd.f32 %v181, %v1032
  %v1034 = vpop.f32.mrf.mxu0
  %v1035 = vadd.f32 %v181, %v1034
  %1036 = vmatprep.mubr.f32.mxu0 0.0
  %1037 = vmatmul.mubr.f32.gmra.mxu0 %v223
  %v1038 = vpop.f32.mrf.mxu0
  %v1039 = vadd.f32 %v186, %v1038
  %v1040 = vpop.f32.mrf.mxu0
  %v1041 = vadd.f32 %v186, %v1040
  %1042 = vmatprep.mubr.f32.mxu0 0.0
  %1043 = vmatmul.mubr.f32.gmra.mxu0 %v226
  %v1044 = vpop.f32.mrf.mxu0
  %v1045 = vadd.f32 %v191, %v1044
  %v1046 = vpop.f32.mrf.mxu0
  %v1047 = vadd.f32 %v191, %v1046
  %1048 = vmatprep.mubr.f32.mxu0 0.0
  %1049 = vmatmul.mubr.f32.gmra.mxu0 %v229
  %v1050 = vpop.f32.mrf.mxu0
  %v1051 = vadd.f32 %v196, %v1050
  %v1052 = vpop.f32.mrf.mxu0
  %v1053 = vadd.f32 %v196, %v1052
  %1054 = vmatprep.mubr.f32.mxu0 0.0
  %1055 = vmatmul.mubr.f32.gmra.mxu0 %v232
  %v1056 = vpop.f32.mrf.mxu0
  %v1057 = vadd.f32 %v201, %v1056
  %v1058 = vpop.f32.mrf.mxu0
  %v1059 = vadd.f32 %v201, %v1058
  %1060 = vmatprep.mubr.f32.mxu0 0.0
  %1061 = vmatmul.mubr.f32.gmra.mxu0 %v235
  %v1062 = vpop.f32.mrf.mxu0
  %v1063 = vadd.f32 %v206, %v1062
  %v1064 = vpop.f32.mrf.mxu0
  %v1065 = vadd.f32 %v206, %v1064
  %1066 = vmatprep.mubr.f32.mxu0 0.0
  %1067 = vmatmul.mubr.f32.gmra.mxu0 %v238
  %v1068 = vpop.f32.mrf.mxu0
  %v1069 = vadd.f32 %v211, %v1068
  %v1070 = vpop.f32.mrf.mxu0
  %v1071 = vadd.f32 %v211, %v1070
  %1072 = vmatprep.mubr.f32.mxu0 0.0
  %1073 = vmatmul.mubr.f32.gmra.mxu0 %v241
  %v1074 = vpop.f32.mrf.mxu0
  %v1075 = vadd.f32 %v216, %v1074
  %v1076 = vpop.f32.mrf.mxu0
  %v1077 = vadd.f32 %v216, %v1076
  %1078 = vdwg.mxu0
  %v1079 = vmax.f32 %v694, 0.0
  %v1080 = vmax.f32 %v696, 0.0
  %v1081 = vmax.f32 %v807, 0.0
  %v1082 = vmax.f32 %v809, 0.0
  %v1083 = vmax.f32 %v920, 0.0
  %v1084 = vmax.f32 %v922, 0.0
  %v1085 = vmax.f32 %v1033, 0.0
  %v1086 = vmax.f32 %v1035, 0.0
  %v1087 = vmax.f32 %v700, 0.0
  %v1088 = vmax.f32 %v702, 0.0
  %v1089 = vmax.f32 %v813, 0.0
  %v1090 = vmax.f32 %v815, 0.0
  %v1091 = vmax.f32 %v926, 0.0
  %v1092 = vmax.f32 %v928, 0.0
  %v1093 = vmax.f32 %v1039, 0.0
  %v1094 = vmax.f32 %v1041, 0.0
  %v1095 = vmax.f32 %v706, 0.0
  %v1096 = vmax.f32 %v708, 0.0
  %v1097 = vmax.f32 %v819, 0.0
  %v1098 = vmax.f32 %v821, 0.0
  %v1099 = vmax.f32 %v932, 0.0
  %v1100 = vmax.f32 %v934, 0.0
  %v1101 = vmax.f32 %v1045, 0.0
  %v1102 = vmax.f32 %v1047, 0.0
  %v1103 = vmax.f32 %v712, 0.0
  %v1104 = vmax.f32 %v714, 0.0
  %v1105 = vmax.f32 %v825, 0.0
  %v1106 = vmax.f32 %v827, 0.0
  %v1107 = vmax.f32 %v938, 0.0
  %v1108 = vmax.f32 %v940, 0.0
  %v1109 = vmax.f32 %v1051, 0.0
  %v1110 = vmax.f32 %v1053, 0.0
  %v1111 = vmax.f32 %v718, 0.0
  %v1112 = vmax.f32 %v720, 0.0
  %v1113 = vmax.f32 %v831, 0.0
  %v1114 = vmax.f32 %v833, 0.0
  %v1115 = vmax.f32 %v944, 0.0
  %v1116 = vmax.f32 %v946, 0.0
  %v1117 = vmax.f32 %v1057, 0.0
  %v1118 = vmax.f32 %v1059, 0.0
  %v1119 = vmax.f32 %v724, 0.0
  %v1120 = vmax.f32 %v726, 0.0
  %v1121 = vmax.f32 %v837, 0.0
  %v1122 = vmax.f32 %v839, 0.0
  %v1123 = vmax.f32 %v950, 0.0
  %v1124 = vmax.f32 %v952, 0.0
  %v1125 = vmax.f32 %v1063, 0.0
  %v1126 = vmax.f32 %v1065, 0.0
  %v1127 = vmax.f32 %v730, 0.0
  %v1128 = vmax.f32 %v732, 0.0
  %v1129 = vmax.f32 %v843, 0.0
  %v1130 = vmax.f32 %v845, 0.0
  %v1131 = vmax.f32 %v956, 0.0
  %v1132 = vmax.f32 %v958, 0.0
  %v1133 = vmax.f32 %v1069, 0.0
  %v1134 = vmax.f32 %v1071, 0.0
  %v1135 = vmax.f32 %v736, 0.0
  %v1136 = vmax.f32 %v738, 0.0
  %v1137 = vmax.f32 %v849, 0.0
  %v1138 = vmax.f32 %v851, 0.0
  %v1139 = vmax.f32 %v962, 0.0
  %v1140 = vmax.f32 %v964, 0.0
  %v1141 = vmax.f32 %v1075, 0.0
  %v1142 = vmax.f32 %v1077, 0.0
  %v1143 = vld [vmem:[%s3] sm:$0xff]
  %v1144 = vld [vmem:[%s3 + $0x8] sm:$0xff]
  %v1145 = vld [vmem:[%s3 + $0x10] sm:$0xff]
  %v1146 = vld [vmem:[%s3 + $0x18] sm:$0xff]
  %v1147 = vld [vmem:[%s4] sm:$0xff]
  %v1148 = vld [vmem:[%s4 + $0x8] sm:$0xff]
  %v1149 = vld [vmem:[%s4 + $0x10] sm:$0xff]
  %v1150 = vld [vmem:[%s4 + $0x18] sm:$0xff]
  %1152 = vset.pattern.permute.xlu0 0
  %1153 = vperm.xlu0 %1152, %v1147
  %v1154 = vpop.permute.xlu0 %1153
  %1157 = vset.pattern.permute.xlu0 0
  %1158 = vperm.xlu0 %1157, %v1148
  %v1159 = vpop.permute.xlu0 %1158
  %1162 = vset.pattern.permute.xlu0 0
  %1163 = vperm.xlu0 %1162, %v1149
  %v1164 = vpop.permute.xlu0 %1163
  %1167 = vset.pattern.permute.xlu0 0
  %1168 = vperm.xlu0 %1167, %v1150
  %v1169 = vpop.permute.xlu0 %1168
  %vm1171 = vcmask 523264
  %v1173 = vsel %vm1171, %v1143, 0
  %v1176 = vsel %vm1171, %v1144, 0
  %v1179 = vsel %vm1171, %v1145, 0
  %v1182 = vsel %vm1171, %v1146, 0
  %1184 = vmatprep.subr.mxu0 0.0
  %1185 = vmatpush1.msra.mxu0 0.0
  %1186 = vmatprep.subr.mxu0 0.0
  %1187 = vmatpush1.msra.mxu0 0.0
  %1188 = vmatprep.subr.mxu0 0.0
  %1189 = vmatpush1.msra.mxu0 0.0
  %1190 = vmatprep.subr.mxu0 0.0
  %1191 = vmatpush1.msra.mxu0 0.0
  %1192 = vmatprep.subr.mxu0 0.0
  %1193 = vmatpush1.msra.mxu0 0.0
  %1194 = vmatprep.subr.mxu0 0.0
  %1195 = vmatpush1.msra.mxu0 0.0
  %1196 = vmatprep.subr.mxu0 0.0
  %1197 = vmatpush1.msra.mxu0 0.0
  %1198 = vmatprep.subr.mxu0 0.0
  %1199 = vmatpush1.msra.mxu0 0.0
  %1200 = vmatprep.subr.mxu0 %v1136
  %1201 = vmatpush1.msra.mxu0 %v1135
  %1202 = vmatprep.subr.mxu0 %v1128
  %1203 = vmatpush1.msra.mxu0 %v1127
  %1204 = vmatprep.subr.mxu0 %v1120
  %1205 = vmatpush1.msra.mxu0 %v1119
  %1206 = vmatprep.subr.mxu0 %v1112
  %1207 = vmatpush1.msra.mxu0 %v1111
  %1208 = vmatprep.subr.mxu0 %v1104
  %1209 = vmatpush1.msra.mxu0 %v1103
  %1210 = vmatprep.subr.mxu0 %v1096
  %1211 = vmatpush1.msra.mxu0 %v1095
  %1212 = vmatprep.subr.mxu0 %v1088
  %1213 = vmatpush1.msra.mxu0 %v1087
  %1214 = vmatprep.subr.mxu0 %v1080
  %1215 = vmatpush1.msra.mxu0 %v1079
  %1216 = vmatprep.subr.mxu0 0.0
  %1217 = vmatpush2.msra.mxu0 0.0
  %1218 = vmatprep.subr.mxu0 0.0
  %1219 = vmatpush2.msra.mxu0 0.0
  %1220 = vmatprep.subr.mxu0 0.0
  %1221 = vmatpush2.msra.mxu0 0.0
  %1222 = vmatprep.subr.mxu0 0.0
  %1223 = vmatpush2.msra.mxu0 0.0
  %1224 = vmatprep.subr.mxu0 0.0
  %1225 = vmatpush2.msra.mxu0 0.0
  %1226 = vmatprep.subr.mxu0 0.0
  %1227 = vmatpush2.msra.mxu0 0.0
  %1228 = vmatprep.subr.mxu0 0.0
  %1229 = vmatpush2.msra.mxu0 0.0
  %1230 = vmatprep.subr.mxu0 0.0
  %1231 = vmatpush2.msra.mxu0 0.0
  %1232 = vmatprep.subr.mxu0 0.0
  %1233 = vmatpush2.msra.mxu0 0.0
  %1234 = vmatprep.subr.mxu0 0.0
  %1235 = vmatpush2.msra.mxu0 0.0
  %1236 = vmatprep.subr.mxu0 0.0
  %1237 = vmatpush2.msra.mxu0 0.0
  %1238 = vmatprep.subr.mxu0 0.0
  %1239 = vmatpush2.msra.mxu0 0.0
  %1240 = vmatprep.subr.mxu0 0.0
  %1241 = vmatpush2.msra.mxu0 0.0
  %1242 = vmatprep.subr.mxu0 0.0
  %1243 = vmatpush2.msra.mxu0 0.0
  %1244 = vmatprep.subr.mxu0 0.0
  %1245 = vmatpush2.msra.mxu0 0.0
  %1246 = vmatprep.subr.mxu0 0.0
  %1247 = vmatpush2.msra.mxu0 0.0
  %1248 = vmatprep.mubr.f32.mxu0 0.0
  %1249 = vmatmul.mubr.f32.gmra.mxu0 %v1173
  %v1250 = vpop.f32.mrf.mxu0
  %v1251 = vadd.f32 %v1154, %v1250
  %v1252 = vpop.f32.mrf.mxu0
  %v1253 = vadd.f32 %v1154, %v1252
  %1254 = vmatprep.mubr.f32.mxu0 0.0
  %1255 = vmatmul.mubr.f32.gmra.mxu0 %v1176
  %v1256 = vpop.f32.mrf.mxu0
  %v1257 = vadd.f32 %v1159, %v1256
  %v1258 = vpop.f32.mrf.mxu0
  %v1259 = vadd.f32 %v1159, %v1258
  %1260 = vmatprep.mubr.f32.mxu0 0.0
  %1261 = vmatmul.mubr.f32.gmra.mxu0 %v1179
  %v1262 = vpop.f32.mrf.mxu0
  %v1263 = vadd.f32 %v1164, %v1262
  %v1264 = vpop.f32.mrf.mxu0
  %v1265 = vadd.f32 %v1164, %v1264
  %1266 = vmatprep.mubr.f32.mxu0 0.0
  %1267 = vmatmul.mubr.f32.gmra.mxu0 %v1182
  %v1268 = vpop.f32.mrf.mxu0
  %v1269 = vadd.f32 %v1169, %v1268
  %v1270 = vpop.f32.mrf.mxu0
  %v1271 = vadd.f32 %v1169, %v1270
  %1272 = vdwg.mxu0
  %1273 = vmatprep.subr.mxu0 0.0
  %1274 = vmatpush1.msra.mxu0 0.0
  %1275 = vmatprep.subr.mxu0 0.0
  %1276 = vmatpush1.msra.mxu0 0.0
  %1277 = vmatprep.subr.mxu0 0.0
  %1278 = vmatpush1.msra.mxu0 0.0
  %1279 = vmatprep.subr.mxu0 0.0
  %1280 = vmatpush1.msra.mxu0 0.0
  %1281 = vmatprep.subr.mxu0 0.0
  %1282 = vmatpush1.msra.mxu0 0.0
  %1283 = vmatprep.subr.mxu0 0.0
  %1284 = vmatpush1.msra.mxu0 0.0
  %1285 = vmatprep.subr.mxu0 0.0
  %1286 = vmatpush1.msra.mxu0 0.0
  %1287 = vmatprep.subr.mxu0 0.0
  %1288 = vmatpush1.msra.mxu0 0.0
  %1289 = vmatprep.subr.mxu0 %v1138
  %1290 = vmatpush1.msra.mxu0 %v1137
  %1291 = vmatprep.subr.mxu0 %v1130
  %1292 = vmatpush1.msra.mxu0 %v1129
  %1293 = vmatprep.subr.mxu0 %v1122
  %1294 = vmatpush1.msra.mxu0 %v1121
  %1295 = vmatprep.subr.mxu0 %v1114
  %1296 = vmatpush1.msra.mxu0 %v1113
  %1297 = vmatprep.subr.mxu0 %v1106
  %1298 = vmatpush1.msra.mxu0 %v1105
  %1299 = vmatprep.subr.mxu0 %v1098
  %1300 = vmatpush1.msra.mxu0 %v1097
  %1301 = vmatprep.subr.mxu0 %v1090
  %1302 = vmatpush1.msra.mxu0 %v1089
  %1303 = vmatprep.subr.mxu0 %v1082
  %1304 = vmatpush1.msra.mxu0 %v1081
  %1305 = vmatprep.subr.mxu0 0.0
  %1306 = vmatpush2.msra.mxu0 0.0
  %1307 = vmatprep.subr.mxu0 0.0
  %1308 = vmatpush2.msra.mxu0 0.0
  %1309 = vmatprep.subr.mxu0 0.0
  %1310 = vmatpush2.msra.mxu0 0.0
  %1311 = vmatprep.subr.mxu0 0.0
  %1312 = vmatpush2.msra.mxu0 0.0
  %1313 = vmatprep.subr.mxu0 0.0
  %1314 = vmatpush2.msra.mxu0 0.0
  %1315 = vmatprep.subr.mxu0 0.0
  %1316 = vmatpush2.msra.mxu0 0.0
  %1317 = vmatprep.subr.mxu0 0.0
  %1318 = vmatpush2.msra.mxu0 0.0
  %1319 = vmatprep.subr.mxu0 0.0
  %1320 = vmatpush2.msra.mxu0 0.0
  %1321 = vmatprep.subr.mxu0 0.0
  %1322 = vmatpush2.msra.mxu0 0.0
  %1323 = vmatprep.subr.mxu0 0.0
  %1324 = vmatpush2.msra.mxu0 0.0
  %1325 = vmatprep.subr.mxu0 0.0
  %1326 = vmatpush2.msra.mxu0 0.0
  %1327 = vmatprep.subr.mxu0 0.0
  %1328 = vmatpush2.msra.mxu0 0.0
  %1329 = vmatprep.subr.mxu0 0.0
  %1330 = vmatpush2.msra.mxu0 0.0
  %1331 = vmatprep.subr.mxu0 0.0
  %1332 = vmatpush2.msra.mxu0 0.0
  %1333 = vmatprep.subr.mxu0 0.0
  %1334 = vmatpush2.msra.mxu0 0.0
  %1335 = vmatprep.subr.mxu0 0.0
  %1336 = vmatpush2.msra.mxu0 0.0
  %1337 = vmatprep.mubr.f32.mxu0 0.0
  %1338 = vmatmul.mubr.f32.gmra.mxu0 %v1173
  %v1339 = vpop.f32.mrf.mxu0
  %v1340 = vadd.f32 %v1154, %v1339
  %v1341 = vpop.f32.mrf.mxu0
  %v1342 = vadd.f32 %v1154, %v1341
  %1343 = vmatprep.mubr.f32.mxu0 0.0
  %1344 = vmatmul.mubr.f32.gmra.mxu0 %v1176
  %v1345 = vpop.f32.mrf.mxu0
  %v1346 = vadd.f32 %v1159, %v1345
  %v1347 = vpop.f32.mrf.mxu0
  %v1348 = vadd.f32 %v1159, %v1347
  %1349 = vmatprep.mubr.f32.mxu0 0.0
  %1350 = vmatmul.mubr.f32.gmra.mxu0 %v1179
  %v1351 = vpop.f32.mrf.mxu0
  %v1352 = vadd.f32 %v1164, %v1351
  %v1353 = vpop.f32.mrf.mxu0
  %v1354 = vadd.f32 %v1164, %v1353
  %1355 = vmatprep.mubr.f32.mxu0 0.0
  %1356 = vmatmul.mubr.f32.gmra.mxu0 %v1182
  %v1357 = vpop.f32.mrf.mxu0
  %v1358 = vadd.f32 %v1169, %v1357
  %v1359 = vpop.f32.mrf.mxu0
  %v1360 = vadd.f32 %v1169, %v1359
  %1361 = vdwg.mxu0
  %1362 = vmatprep.subr.mxu0 0.0
  %1363 = vmatpush1.msra.mxu0 0.0
  %1364 = vmatprep.subr.mxu0 0.0
  %1365 = vmatpush1.msra.mxu0 0.0
  %1366 = vmatprep.subr.mxu0 0.0
  %1367 = vmatpush1.msra.mxu0 0.0
  %1368 = vmatprep.subr.mxu0 0.0
  %1369 = vmatpush1.msra.mxu0 0.0
  %1370 = vmatprep.subr.mxu0 0.0
  %1371 = vmatpush1.msra.mxu0 0.0
  %1372 = vmatprep.subr.mxu0 0.0
  %1373 = vmatpush1.msra.mxu0 0.0
  %1374 = vmatprep.subr.mxu0 0.0
  %1375 = vmatpush1.msra.mxu0 0.0
  %1376 = vmatprep.subr.mxu0 0.0
  %1377 = vmatpush1.msra.mxu0 0.0
  %1378 = vmatprep.subr.mxu0 %v1140
  %1379 = vmatpush1.msra.mxu0 %v1139
  %1380 = vmatprep.subr.mxu0 %v1132
  %1381 = vmatpush1.msra.mxu0 %v1131
  %1382 = vmatprep.subr.mxu0 %v1124
  %1383 = vmatpush1.msra.mxu0 %v1123
  %1384 = vmatprep.subr.mxu0 %v1116
  %1385 = vmatpush1.msra.mxu0 %v1115
  %1386 = vmatprep.subr.mxu0 %v1108
  %1387 = vmatpush1.msra.mxu0 %v1107
  %1388 = vmatprep.subr.mxu0 %v1100
  %1389 = vmatpush1.msra.mxu0 %v1099
  %1390 = vmatprep.subr.mxu0 %v1092
  %1391 = vmatpush1.msra.mxu0 %v1091
  %1392 = vmatprep.subr.mxu0 %v1084
  %1393 = vmatpush1.msra.mxu0 %v1083
  %1394 = vmatprep.subr.mxu0 0.0
  %1395 = vmatpush2.msra.mxu0 0.0
  %1396 = vmatprep.subr.mxu0 0.0
  %1397 = vmatpush2.msra.mxu0 0.0
  %1398 = vmatprep.subr.mxu0 0.0
  %1399 = vmatpush2.msra.mxu0 0.0
  %1400 = vmatprep.subr.mxu0 0.0
  %1401 = vmatpush2.msra.mxu0 0.0
  %1402 = vmatprep.subr.mxu0 0.0
  %1403 = vmatpush2.msra.mxu0 0.0
  %1404 = vmatprep.subr.mxu0 0.0
  %1405 = vmatpush2.msra.mxu0 0.0
  %1406 = vmatprep.subr.mxu0 0.0
  %1407 = vmatpush2.msra.mxu0 0.0
  %1408 = vmatprep.subr.mxu0 0.0
  %1409 = vmatpush2.msra.mxu0 0.0
  %1410 = vmatprep.subr.mxu0 0.0
  %1411 = vmatpush2.msra.mxu0 0.0
  %1412 = vmatprep.subr.mxu0 0.0
  %1413 = vmatpush2.msra.mxu0 0.0
  %1414 = vmatprep.subr.mxu0 0.0
  %1415 = vmatpush2.msra.mxu0 0.0
  %1416 = vmatprep.subr.mxu0 0.0
  %1417 = vmatpush2.msra.mxu0 0.0
  %1418 = vmatprep.subr.mxu0 0.0
  %1419 = vmatpush2.msra.mxu0 0.0
  %1420 = vmatprep.subr.mxu0 0.0
  %1421 = vmatpush2.msra.mxu0 0.0
  %1422 = vmatprep.subr.mxu0 0.0
  %1423 = vmatpush2.msra.mxu0 0.0
  %1424 = vmatprep.subr.mxu0 0.0
  %1425 = vmatpush2.msra.mxu0 0.0
  %1426 = vmatprep.mubr.f32.mxu0 0.0
  %1427 = vmatmul.mubr.f32.gmra.mxu0 %v1173
  %v1428 = vpop.f32.mrf.mxu0
  %v1429 = vadd.f32 %v1154, %v1428
  %v1430 = vpop.f32.mrf.mxu0
  %v1431 = vadd.f32 %v1154, %v1430
  %1432 = vmatprep.mubr.f32.mxu0 0.0
  %1433 = vmatmul.mubr.f32.gmra.mxu0 %v1176
  %v1434 = vpop.f32.mrf.mxu0
  %v1435 = vadd.f32 %v1159, %v1434
  %v1436 = vpop.f32.mrf.mxu0
  %v1437 = vadd.f32 %v1159, %v1436
  %1438 = vmatprep.mubr.f32.mxu0 0.0
  %1439 = vmatmul.mubr.f32.gmra.mxu0 %v1179
  %v1440 = vpop.f32.mrf.mxu0
  %v1441 = vadd.f32 %v1164, %v1440
  %v1442 = vpop.f32.mrf.mxu0
  %v1443 = vadd.f32 %v1164, %v1442
  %1444 = vmatprep.mubr.f32.mxu0 0.0
  %1445 = vmatmul.mubr.f32.gmra.mxu0 %v1182
  %v1446 = vpop.f32.mrf.mxu0
  %v1447 = vadd.f32 %v1169, %v1446
  %v1448 = vpop.f32.mrf.mxu0
  %v1449 = vadd.f32 %v1169, %v1448
  %1450 = vdwg.mxu0
  %1451 = vmatprep.subr.mxu0 0.0
  %1452 = vmatpush1.msra.mxu0 0.0
  %1453 = vmatprep.subr.mxu0 0.0
  %1454 = vmatpush1.msra.mxu0 0.0
  %1455 = vmatprep.subr.mxu0 0.0
  %1456 = vmatpush1.msra.mxu0 0.0
  %1457 = vmatprep.subr.mxu0 0.0
  %1458 = vmatpush1.msra.mxu0 0.0
  %1459 = vmatprep.subr.mxu0 0.0
  %1460 = vmatpush1.msra.mxu0 0.0
  %1461 = vmatprep.subr.mxu0 0.0
  %1462 = vmatpush1.msra.mxu0 0.0
  %1463 = vmatprep.subr.mxu0 0.0
  %1464 = vmatpush1.msra.mxu0 0.0
  %1465 = vmatprep.subr.mxu0 0.0
  %1466 = vmatpush1.msra.mxu0 0.0
  %1467 = vmatprep.subr.mxu0 %v1142
  %1468 = vmatpush1.msra.mxu0 %v1141
  %1469 = vmatprep.subr.mxu0 %v1134
  %1470 = vmatpush1.msra.mxu0 %v1133
  %1471 = vmatprep.subr.mxu0 %v1126
  %1472 = vmatpush1.msra.mxu0 %v1125
  %1473 = vmatprep.subr.mxu0 %v1118
  %1474 = vmatpush1.msra.mxu0 %v1117
  %1475 = vmatprep.subr.mxu0 %v1110
  %1476 = vmatpush1.msra.mxu0 %v1109
  %1477 = vmatprep.subr.mxu0 %v1102
  %1478 = vmatpush1.msra.mxu0 %v1101
  %1479 = vmatprep.subr.mxu0 %v1094
  %1480 = vmatpush1.msra.mxu0 %v1093
  %1481 = vmatprep.subr.mxu0 %v1086
  %1482 = vmatpush1.msra.mxu0 %v1085
  %1483 = vmatprep.subr.mxu0 0.0
  %1484 = vmatpush2.msra.mxu0 0.0
  %1485 = vmatprep.subr.mxu0 0.0
  %1486 = vmatpush2.msra.mxu0 0.0
  %1487 = vmatprep.subr.mxu0 0.0
  %1488 = vmatpush2.msra.mxu0 0.0
  %1489 = vmatprep.subr.mxu0 0.0
  %1490 = vmatpush2.msra.mxu0 0.0
  %1491 = vmatprep.subr.mxu0 0.0
  %1492 = vmatpush2.msra.mxu0 0.0
  %1493 = vmatprep.subr.mxu0 0.0
  %1494 = vmatpush2.msra.mxu0 0.0
  %1495 = vmatprep.subr.mxu0 0.0
  %1496 = vmatpush2.msra.mxu0 0.0
  %1497 = vmatprep.subr.mxu0 0.0
  %1498 = vmatpush2.msra.mxu0 0.0
  %1499 = vmatprep.subr.mxu0 0.0
  %1500 = vmatpush2.msra.mxu0 0.0
  %1501 = vmatprep.subr.mxu0 0.0
  %1502 = vmatpush2.msra.mxu0 0.0
  %1503 = vmatprep.subr.mxu0 0.0
  %1504 = vmatpush2.msra.mxu0 0.0
  %1505 = vmatprep.subr.mxu0 0.0
  %1506 = vmatpush2.msra.mxu0 0.0
  %1507 = vmatprep.subr.mxu0 0.0
  %1508 = vmatpush2.msra.mxu0 0.0
  %1509 = vmatprep.subr.mxu0 0.0
  %1510 = vmatpush2.msra.mxu0 0.0
  %1511 = vmatprep.subr.mxu0 0.0
  %1512 = vmatpush2.msra.mxu0 0.0
  %1513 = vmatprep.subr.mxu0 0.0
  %1514 = vmatpush2.msra.mxu0 0.0
  %1515 = vmatprep.mubr.f32.mxu0 0.0
  %1516 = vmatmul.mubr.f32.gmra.mxu0 %v1173
  %v1517 = vpop.f32.mrf.mxu0
  %v1518 = vadd.f32 %v1154, %v1517
  %v1519 = vpop.f32.mrf.mxu0
  %v1520 = vadd.f32 %v1154, %v1519
  %1521 = vmatprep.mubr.f32.mxu0 0.0
  %1522 = vmatmul.mubr.f32.gmra.mxu0 %v1176
  %v1523 = vpop.f32.mrf.mxu0
  %v1524 = vadd.f32 %v1159, %v1523
  %v1525 = vpop.f32.mrf.mxu0
  %v1526 = vadd.f32 %v1159, %v1525
  %1527 = vmatprep.mubr.f32.mxu0 0.0
  %1528 = vmatmul.mubr.f32.gmra.mxu0 %v1179
  %v1529 = vpop.f32.mrf.mxu0
  %v1530 = vadd.f32 %v1164, %v1529
  %v1531 = vpop.f32.mrf.mxu0
  %v1532 = vadd.f32 %v1164, %v1531
  %1533 = vmatprep.mubr.f32.mxu0 0.0
  %1534 = vmatmul.mubr.f32.gmra.mxu0 %v1182
  %v1535 = vpop.f32.mrf.mxu0
  %v1536 = vadd.f32 %v1169, %v1535
  %v1537 = vpop.f32.mrf.mxu0
  %v1538 = vadd.f32 %v1169, %v1537
  %1539 = vdwg.mxu0
  %v1540 = vmax.f32 %v1251, 0.0
  %v1541 = vmax.f32 %v1253, 0.0
  %v1542 = vmax.f32 %v1340, 0.0
  %v1543 = vmax.f32 %v1342, 0.0
  %v1544 = vmax.f32 %v1429, 0.0
  %v1545 = vmax.f32 %v1431, 0.0
  %v1546 = vmax.f32 %v1518, 0.0
  %v1547 = vmax.f32 %v1520, 0.0
  %v1548 = vmax.f32 %v1257, 0.0
  %v1549 = vmax.f32 %v1259, 0.0
  %v1550 = vmax.f32 %v1346, 0.0
  %v1551 = vmax.f32 %v1348, 0.0
  %v1552 = vmax.f32 %v1435, 0.0
  %v1553 = vmax.f32 %v1437, 0.0
  %v1554 = vmax.f32 %v1524, 0.0
  %v1555 = vmax.f32 %v1526, 0.0
  %v1556 = vmax.f32 %v1263, 0.0
  %v1557 = vmax.f32 %v1265, 0.0
  %v1558 = vmax.f32 %v1352, 0.0
  %v1559 = vmax.f32 %v1354, 0.0
  %v1560 = vmax.f32 %v1441, 0.0
  %v1561 = vmax.f32 %v1443, 0.0
  %v1562 = vmax.f32 %v1530, 0.0
  %v1563 = vmax.f32 %v1532, 0.0
  %v1564 = vmax.f32 %v1269, 0.0
  %v1565 = vmax.f32 %v1271, 0.0
  %v1566 = vmax.f32 %v1358, 0.0
  %v1567 = vmax.f32 %v1360, 0.0
  %v1568 = vmax.f32 %v1447, 0.0
  %v1569 = vmax.f32 %v1449, 0.0
  %v1570 = vmax.f32 %v1536, 0.0
  %v1571 = vmax.f32 %v1538, 0.0
  %v1572 = vld [vmem:[%s5] sm:$0xff]
  %v1573 = vld [vmem:[%s5 + $0x8] sm:$0xff]
  %v1574 = vld [vmem:[%s6] sm:$0xff]
  %v1575 = vld [vmem:[%s6 + $0x8] sm:$0xff]
  %1577 = vset.pattern.permute.xlu0 0
  %1578 = vperm.xlu0 %1577, %v1574
  %v1579 = vpop.permute.xlu0 %1578
  %1582 = vset.pattern.permute.xlu0 0
  %1583 = vperm.xlu0 %1582, %v1575
  %v1584 = vpop.permute.xlu0 %1583
  %vm1586 = vcmask 261120
  %v1588 = vsel %vm1586, %v1572, 0
  %v1591 = vsel %vm1586, %v1573, 0
  %1593 = vmatprep.subr.mxu0 0.0
  %1594 = vmatpush1.msra.mxu0 0.0
  %1595 = vmatprep.subr.mxu0 0.0
  %1596 = vmatpush1.msra.mxu0 0.0
  %1597 = vmatprep.subr.mxu0 0.0
  %1598 = vmatpush1.msra.mxu0 0.0
  %1599 = vmatprep.subr.mxu0 0.0
  %1600 = vmatpush1.msra.mxu0 0.0
  %1601 = vmatprep.subr.mxu0 0.0
  %1602 = vmatpush1.msra.mxu0 0.0
  %1603 = vmatprep.subr.mxu0 0.0
  %1604 = vmatpush1.msra.mxu0 0.0
  %1605 = vmatprep.subr.mxu0 0.0
  %1606 = vmatpush1.msra.mxu0 0.0
  %1607 = vmatprep.subr.mxu0 0.0
  %1608 = vmatpush1.msra.mxu0 0.0
  %1609 = vmatprep.subr.mxu0 0.0
  %1610 = vmatpush1.msra.mxu0 0.0
  %1611 = vmatprep.subr.mxu0 0.0
  %1612 = vmatpush1.msra.mxu0 0.0
  %1613 = vmatprep.subr.mxu0 0.0
  %1614 = vmatpush1.msra.mxu0 0.0
  %1615 = vmatprep.subr.mxu0 0.0
  %1616 = vmatpush1.msra.mxu0 0.0
  %1617 = vmatprep.subr.mxu0 %v1565
  %1618 = vmatpush1.msra.mxu0 %v1564
  %1619 = vmatprep.subr.mxu0 %v1557
  %1620 = vmatpush1.msra.mxu0 %v1556
  %1621 = vmatprep.subr.mxu0 %v1549
  %1622 = vmatpush1.msra.mxu0 %v1548
  %1623 = vmatprep.subr.mxu0 %v1541
  %1624 = vmatpush1.msra.mxu0 %v1540
  %1625 = vmatprep.subr.mxu0 0.0
  %1626 = vmatpush2.msra.mxu0 0.0
  %1627 = vmatprep.subr.mxu0 0.0
  %1628 = vmatpush2.msra.mxu0 0.0
  %1629 = vmatprep.subr.mxu0 0.0
  %1630 = vmatpush2.msra.mxu0 0.0
  %1631 = vmatprep.subr.mxu0 0.0
  %1632 = vmatpush2.msra.mxu0 0.0
  %1633 = vmatprep.subr.mxu0 0.0
  %1634 = vmatpush2.msra.mxu0 0.0
  %1635 = vmatprep.subr.mxu0 0.0
  %1636 = vmatpush2.msra.mxu0 0.0
  %1637 = vmatprep.subr.mxu0 0.0
  %1638 = vmatpush2.msra.mxu0 0.0
  %1639 = vmatprep.subr.mxu0 0.0
  %1640 = vmatpush2.msra.mxu0 0.0
  %1641 = vmatprep.subr.mxu0 0.0
  %1642 = vmatpush2.msra.mxu0 0.0
  %1643 = vmatprep.subr.mxu0 0.0
  %1644 = vmatpush2.msra.mxu0 0.0
  %1645 = vmatprep.subr.mxu0 0.0
  %1646 = vmatpush2.msra.mxu0 0.0
  %1647 = vmatprep.subr.mxu0 0.0
  %1648 = vmatpush2.msra.mxu0 0.0
  %1649 = vmatprep.subr.mxu0 0.0
  %1650 = vmatpush2.msra.mxu0 0.0
  %1651 = vmatprep.subr.mxu0 0.0
  %1652 = vmatpush2.msra.mxu0 0.0
  %1653 = vmatprep.subr.mxu0 0.0
  %1654 = vmatpush2.msra.mxu0 0.0
  %1655 = vmatprep.subr.mxu0 0.0
  %1656 = vmatpush2.msra.mxu0 0.0
  %1657 = vmatprep.mubr.f32.mxu0 0.0
  %1658 = vmatmul.mubr.f32.gmra.mxu0 %v1588
  %v1659 = vpop.f32.mrf.mxu0
  %v1660 = vadd.f32 %v1579, %v1659
  %v1661 = vpop.f32.mrf.mxu0
  %v1662 = vadd.f32 %v1579, %v1661
  %1663 = vmatprep.mubr.f32.mxu0 0.0
  %1664 = vmatmul.mubr.f32.gmra.mxu0 %v1591
  %v1665 = vpop.f32.mrf.mxu0
  %v1666 = vadd.f32 %v1584, %v1665
  %v1667 = vpop.f32.mrf.mxu0
  %v1668 = vadd.f32 %v1584, %v1667
  %1669 = vdwg.mxu0
  %1670 = vmatprep.subr.mxu0 0.0
  %1671 = vmatpush1.msra.mxu0 0.0
  %1672 = vmatprep.subr.mxu0 0.0
  %1673 = vmatpush1.msra.mxu0 0.0
  %1674 = vmatprep.subr.mxu0 0.0
  %1675 = vmatpush1.msra.mxu0 0.0
  %1676 = vmatprep.subr.mxu0 0.0
  %1677 = vmatpush1.msra.mxu0 0.0
  %1678 = vmatprep.subr.mxu0 0.0
  %1679 = vmatpush1.msra.mxu0 0.0
  %1680 = vmatprep.subr.mxu0 0.0
  %1681 = vmatpush1.msra.mxu0 0.0
  %1682 = vmatprep.subr.mxu0 0.0
  %1683 = vmatpush1.msra.mxu0 0.0
  %1684 = vmatprep.subr.mxu0 0.0
  %1685 = vmatpush1.msra.mxu0 0.0
  %1686 = vmatprep.subr.mxu0 0.0
  %1687 = vmatpush1.msra.mxu0 0.0
  %1688 = vmatprep.subr.mxu0 0.0
  %1689 = vmatpush1.msra.mxu0 0.0
  %1690 = vmatprep.subr.mxu0 0.0
  %1691 = vmatpush1.msra.mxu0 0.0
  %1692 = vmatprep.subr.mxu0 0.0
  %1693 = vmatpush1.msra.mxu0 0.0
  %1694 = vmatprep.subr.mxu0 %v1567
  %1695 = vmatpush1.msra.mxu0 %v1566
  %1696 = vmatprep.subr.mxu0 %v1559
  %1697 = vmatpush1.msra.mxu0 %v1558
  %1698 = vmatprep.subr.mxu0 %v1551
  %1699 = vmatpush1.msra.mxu0 %v1550
  %1700 = vmatprep.subr.mxu0 %v1543
  %1701 = vmatpush1.msra.mxu0 %v1542
  %1702 = vmatprep.subr.mxu0 0.0
  %1703 = vmatpush2.msra.mxu0 0.0
  %1704 = vmatprep.subr.mxu0 0.0
  %1705 = vmatpush2.msra.mxu0 0.0
  %1706 = vmatprep.subr.mxu0 0.0
  %1707 = vmatpush2.msra.mxu0 0.0
  %1708 = vmatprep.subr.mxu0 0.0
  %1709 = vmatpush2.msra.mxu0 0.0
  %1710 = vmatprep.subr.mxu0 0.0
  %1711 = vmatpush2.msra.mxu0 0.0
  %1712 = vmatprep.subr.mxu0 0.0
  %1713 = vmatpush2.msra.mxu0 0.0
  %1714 = vmatprep.subr.mxu0 0.0
  %1715 = vmatpush2.msra.mxu0 0.0
  %1716 = vmatprep.subr.mxu0 0.0
  %1717 = vmatpush2.msra.mxu0 0.0
  %1718 = vmatprep.subr.mxu0 0.0
  %1719 = vmatpush2.msra.mxu0 0.0
  %1720 = vmatprep.subr.mxu0 0.0
  %1721 = vmatpush2.msra.mxu0 0.0
  %1722 = vmatprep.subr.mxu0 0.0
  %1723 = vmatpush2.msra.mxu0 0.0
  %1724 = vmatprep.subr.mxu0 0.0
  %1725 = vmatpush2.msra.mxu0 0.0
  %1726 = vmatprep.subr.mxu0 0.0
  %1727 = vmatpush2.msra.mxu0 0.0
  %1728 = vmatprep.subr.mxu0 0.0
  %1729 = vmatpush2.msra.mxu0 0.0
  %1730 = vmatprep.subr.mxu0 0.0
  %1731 = vmatpush2.msra.mxu0 0.0
  %1732 = vmatprep.subr.mxu0 0.0
  %1733 = vmatpush2.msra.mxu0 0.0
  %1734 = vmatprep.mubr.f32.mxu0 0.0
  %1735 = vmatmul.mubr.f32.gmra.mxu0 %v1588
  %v1736 = vpop.f32.mrf.mxu0
  %v1737 = vadd.f32 %v1579, %v1736
  %v1738 = vpop.f32.mrf.mxu0
  %v1739 = vadd.f32 %v1579, %v1738
  %1740 = vmatprep.mubr.f32.mxu0 0.0
  %1741 = vmatmul.mubr.f32.gmra.mxu0 %v1591
  %v1742 = vpop.f32.mrf.mxu0
  %v1743 = vadd.f32 %v1584, %v1742
  %v1744 = vpop.f32.mrf.mxu0
  %v1745 = vadd.f32 %v1584, %v1744
  %1746 = vdwg.mxu0
  %1747 = vmatprep.subr.mxu0 0.0
  %1748 = vmatpush1.msra.mxu0 0.0
  %1749 = vmatprep.subr.mxu0 0.0
  %1750 = vmatpush1.msra.mxu0 0.0
  %1751 = vmatprep.subr.mxu0 0.0
  %1752 = vmatpush1.msra.mxu0 0.0
  %1753 = vmatprep.subr.mxu0 0.0
  %1754 = vmatpush1.msra.mxu0 0.0
  %1755 = vmatprep.subr.mxu0 0.0
  %1756 = vmatpush1.msra.mxu0 0.0
  %1757 = vmatprep.subr.mxu0 0.0
  %1758 = vmatpush1.msra.mxu0 0.0
  %1759 = vmatprep.subr.mxu0 0.0
  %1760 = vmatpush1.msra.mxu0 0.0
  %1761 = vmatprep.subr.mxu0 0.0
  %1762 = vmatpush1.msra.mxu0 0.0
  %1763 = vmatprep.subr.mxu0 0.0
  %1764 = vmatpush1.msra.mxu0 0.0
  %1765 = vmatprep.subr.mxu0 0.0
  %1766 = vmatpush1.msra.mxu0 0.0
  %1767 = vmatprep.subr.mxu0 0.0
  %1768 = vmatpush1.msra.mxu0 0.0
  %1769 = vmatprep.subr.mxu0 0.0
  %1770 = vmatpush1.msra.mxu0 0.0
  %1771 = vmatprep.subr.mxu0 %v1569
  %1772 = vmatpush1.msra.mxu0 %v1568
  %1773 = vmatprep.subr.mxu0 %v1561
  %1774 = vmatpush1.msra.mxu0 %v1560
  %1775 = vmatprep.subr.mxu0 %v1553
  %1776 = vmatpush1.msra.mxu0 %v1552
  %1777 = vmatprep.subr.mxu0 %v1545
  %1778 = vmatpush1.msra.mxu0 %v1544
  %1779 = vmatprep.subr.mxu0 0.0
  %1780 = vmatpush2.msra.mxu0 0.0
  %1781 = vmatprep.subr.mxu0 0.0
  %1782 = vmatpush2.msra.mxu0 0.0
  %1783 = vmatprep.subr.mxu0 0.0
  %1784 = vmatpush2.msra.mxu0 0.0
  %1785 = vmatprep.subr.mxu0 0.0
  %1786 = vmatpush2.msra.mxu0 0.0
  %1787 = vmatprep.subr.mxu0 0.0
  %1788 = vmatpush2.msra.mxu0 0.0
  %1789 = vmatprep.subr.mxu0 0.0
  %1790 = vmatpush2.msra.mxu0 0.0
  %1791 = vmatprep.subr.mxu0 0.0
  %1792 = vmatpush2.msra.mxu0 0.0
  %1793 = vmatprep.subr.mxu0 0.0
  %1794 = vmatpush2.msra.mxu0 0.0
  %1795 = vmatprep.subr.mxu0 0.0
  %1796 = vmatpush2.msra.mxu0 0.0
  %1797 = vmatprep.subr.mxu0 0.0
  %1798 = vmatpush2.msra.mxu0 0.0
  %1799 = vmatprep.subr.mxu0 0.0
  %1800 = vmatpush2.msra.mxu0 0.0
  %1801 = vmatprep.subr.mxu0 0.0
  %1802 = vmatpush2.msra.mxu0 0.0
  %1803 = vmatprep.subr.mxu0 0.0
  %1804 = vmatpush2.msra.mxu0 0.0
  %1805 = vmatprep.subr.mxu0 0.0
  %1806 = vmatpush2.msra.mxu0 0.0
  %1807 = vmatprep.subr.mxu0 0.0
  %1808 = vmatpush2.msra.mxu0 0.0
  %1809 = vmatprep.subr.mxu0 0.0
  %1810 = vmatpush2.msra.mxu0 0.0
  %1811 = vmatprep.mubr.f32.mxu0 0.0
  %1812 = vmatmul.mubr.f32.gmra.mxu0 %v1588
  %v1813 = vpop.f32.mrf.mxu0
  %v1814 = vadd.f32 %v1579, %v1813
  %v1815 = vpop.f32.mrf.mxu0
  %v1816 = vadd.f32 %v1579, %v1815
  %1817 = vmatprep.mubr.f32.mxu0 0.0
  %1818 = vmatmul.mubr.f32.gmra.mxu0 %v1591
  %v1819 = vpop.f32.mrf.mxu0
  %v1820 = vadd.f32 %v1584, %v1819
  %v1821 = vpop.f32.mrf.mxu0
  %v1822 = vadd.f32 %v1584, %v1821
  %1823 = vdwg.mxu0
  %1824 = vmatprep.subr.mxu0 0.0
  %1825 = vmatpush1.msra.mxu0 0.0
  %1826 = vmatprep.subr.mxu0 0.0
  %1827 = vmatpush1.msra.mxu0 0.0
  %1828 = vmatprep.subr.mxu0 0.0
  %1829 = vmatpush1.msra.mxu0 0.0
  %1830 = vmatprep.subr.mxu0 0.0
  %1831 = vmatpush1.msra.mxu0 0.0
  %1832 = vmatprep.subr.mxu0 0.0
  %1833 = vmatpush1.msra.mxu0 0.0
  %1834 = vmatprep.subr.mxu0 0.0
  %1835 = vmatpush1.msra.mxu0 0.0
  %1836 = vmatprep.subr.mxu0 0.0
  %1837 = vmatpush1.msra.mxu0 0.0
  %1838 = vmatprep.subr.mxu0 0.0
  %1839 = vmatpush1.msra.mxu0 0.0
  %1840 = vmatprep.subr.mxu0 0.0
  %1841 = vmatpush1.msra.mxu0 0.0
  %1842 = vmatprep.subr.mxu0 0.0
  %1843 = vmatpush1.msra.mxu0 0.0
  %1844 = vmatprep.subr.mxu0 0.0
  %1845 = vmatpush1.msra.mxu0 0.0
  %1846 = vmatprep.subr.mxu0 0.0
  %1847 = vmatpush1.msra.mxu0 0.0
  %1848 = vmatprep.subr.mxu0 %v1571
  %1849 = vmatpush1.msra.mxu0 %v1570
  %1850 = vmatprep.subr.mxu0 %v1563
  %1851 = vmatpush1.msra.mxu0 %v1562
  %1852 = vmatprep.subr.mxu0 %v1555
  %1853 = vmatpush1.msra.mxu0 %v1554
  %1854 = vmatprep.subr.mxu0 %v1547
  %1855 = vmatpush1.msra.mxu0 %v1546
  %1856 = vmatprep.subr.mxu0 0.0
  %1857 = vmatpush2.msra.mxu0 0.0
  %1858 = vmatprep.subr.mxu0 0.0
  %1859 = vmatpush2.msra.mxu0 0.0
  %1860 = vmatprep.subr.mxu0 0.0
  %1861 = vmatpush2.msra.mxu0 0.0
  %1862 = vmatprep.subr.mxu0 0.0
  %1863 = vmatpush2.msra.mxu0 0.0
  %1864 = vmatprep.subr.mxu0 0.0
  %1865 = vmatpush2.msra.mxu0 0.0
  %1866 = vmatprep.subr.mxu0 0.0
  %1867 = vmatpush2.msra.mxu0 0.0
  %1868 = vmatprep.subr.mxu0 0.0
  %1869 = vmatpush2.msra.mxu0 0.0
  %1870 = vmatprep.subr.mxu0 0.0
  %1871 = vmatpush2.msra.mxu0 0.0
  %1872 = vmatprep.subr.mxu0 0.0
  %1873 = vmatpush2.msra.mxu0 0.0
  %1874 = vmatprep.subr.mxu0 0.0
  %1875 = vmatpush2.msra.mxu0 0.0
  %1876 = vmatprep.subr.mxu0 0.0
  %1877 = vmatpush2.msra.mxu0 0.0
  %1878 = vmatprep.subr.mxu0 0.0
  %1879 = vmatpush2.msra.mxu0 0.0
  %1880 = vmatprep.subr.mxu0 0.0
  %1881 = vmatpush2.msra.mxu0 0.0
  %1882 = vmatprep.subr.mxu0 0.0
  %1883 = vmatpush2.msra.mxu0 0.0
  %1884 = vmatprep.subr.mxu0 0.0
  %1885 = vmatpush2.msra.mxu0 0.0
  %1886 = vmatprep.subr.mxu0 0.0
  %1887 = vmatpush2.msra.mxu0 0.0
  %1888 = vmatprep.mubr.f32.mxu0 0.0
  %1889 = vmatmul.mubr.f32.gmra.mxu0 %v1588
  %v1890 = vpop.f32.mrf.mxu0
  %v1891 = vadd.f32 %v1579, %v1890
  %v1892 = vpop.f32.mrf.mxu0
  %v1893 = vadd.f32 %v1579, %v1892
  %1894 = vmatprep.mubr.f32.mxu0 0.0
  %1895 = vmatmul.mubr.f32.gmra.mxu0 %v1591
  %v1896 = vpop.f32.mrf.mxu0
  %v1897 = vadd.f32 %v1584, %v1896
  %v1898 = vpop.f32.mrf.mxu0
  %v1899 = vadd.f32 %v1584, %v1898
  %1900 = vdwg.mxu0
  %v1901 = vmax.f32 %v1660, 0.0
  %v1902 = vmax.f32 %v1662, 0.0
  %v1903 = vmax.f32 %v1737, 0.0
  %v1904 = vmax.f32 %v1739, 0.0
  %v1905 = vmax.f32 %v1814, 0.0
  %v1906 = vmax.f32 %v1816, 0.0
  %v1907 = vmax.f32 %v1891, 0.0
  %v1908 = vmax.f32 %v1893, 0.0
  %v1909 = vmax.f32 %v1666, 0.0
  %v1910 = vmax.f32 %v1668, 0.0
  %v1911 = vmax.f32 %v1743, 0.0
  %v1912 = vmax.f32 %v1745, 0.0
  %v1913 = vmax.f32 %v1820, 0.0
  %v1914 = vmax.f32 %v1822, 0.0
  %v1915 = vmax.f32 %v1897, 0.0
  %v1916 = vmax.f32 %v1899, 0.0
  %v1917 = vld [vmem:[%s7] sm:$0x1]
  %v1918 = vld [vmem:[#allocation2] sm:$0x1]
  %1920 = vset.pattern.permute.xlu0 0
  %1921 = vperm.xlu0 %1920, %v1918
  %v1922 = vpop.permute.xlu0 %1921
  %v1924 = vlaneseq
  %v1925 = vshrl.u32 %v1924, 7
  %v1926 = vsub.s32 0, %v1925
  %v1927 = vrot.slane %v1922, %v1926
  %vm1928 = vcmask 130048
  %v1930 = vsel %vm1928, %v1917, 0
  %1932 = vmatprep.subr.mxu0 0.0
  %1933 = vmatpush1.msra.mxu0 0.0
  %1934 = vmatprep.subr.mxu0 0.0
  %1935 = vmatpush1.msra.mxu0 0.0
  %1936 = vmatprep.subr.mxu0 0.0
  %1937 = vmatpush1.msra.mxu0 0.0
  %1938 = vmatprep.subr.mxu0 0.0
  %1939 = vmatpush1.msra.mxu0 0.0
  %1940 = vmatprep.subr.mxu0 0.0
  %1941 = vmatpush1.msra.mxu0 0.0
  %1942 = vmatprep.subr.mxu0 0.0
  %1943 = vmatpush1.msra.mxu0 0.0
  %1944 = vmatprep.subr.mxu0 0.0
  %1945 = vmatpush1.msra.mxu0 0.0
  %1946 = vmatprep.subr.mxu0 0.0
  %1947 = vmatpush1.msra.mxu0 0.0
  %1948 = vmatprep.subr.mxu0 0.0
  %1949 = vmatpush1.msra.mxu0 0.0
  %1950 = vmatprep.subr.mxu0 0.0
  %1951 = vmatpush1.msra.mxu0 0.0
  %1952 = vmatprep.subr.mxu0 0.0
  %1953 = vmatpush1.msra.mxu0 0.0
  %1954 = vmatprep.subr.mxu0 0.0
  %1955 = vmatpush1.msra.mxu0 0.0
  %1956 = vmatprep.subr.mxu0 0.0
  %1957 = vmatpush1.msra.mxu0 0.0
  %1958 = vmatprep.subr.mxu0 0.0
  %1959 = vmatpush1.msra.mxu0 0.0
  %1960 = vmatprep.subr.mxu0 %v1910
  %1961 = vmatpush1.msra.mxu0 %v1909
  %1962 = vmatprep.subr.mxu0 %v1902
  %1963 = vmatpush1.msra.mxu0 %v1901
  %1964 = vmatprep.subr.mxu0 0.0
  %1965 = vmatpush2.msra.mxu0 0.0
  %1966 = vmatprep.subr.mxu0 0.0
  %1967 = vmatpush2.msra.mxu0 0.0
  %1968 = vmatprep.subr.mxu0 0.0
  %1969 = vmatpush2.msra.mxu0 0.0
  %1970 = vmatprep.subr.mxu0 0.0
  %1971 = vmatpush2.msra.mxu0 0.0
  %1972 = vmatprep.subr.mxu0 0.0
  %1973 = vmatpush2.msra.mxu0 0.0
  %1974 = vmatprep.subr.mxu0 0.0
  %1975 = vmatpush2.msra.mxu0 0.0
  %1976 = vmatprep.subr.mxu0 0.0
  %1977 = vmatpush2.msra.mxu0 0.0
  %1978 = vmatprep.subr.mxu0 0.0
  %1979 = vmatpush2.msra.mxu0 0.0
  %1980 = vmatprep.subr.mxu0 0.0
  %1981 = vmatpush2.msra.mxu0 0.0
  %1982 = vmatprep.subr.mxu0 0.0
  %1983 = vmatpush2.msra.mxu0 0.0
  %1984 = vmatprep.subr.mxu0 0.0
  %1985 = vmatpush2.msra.mxu0 0.0
  %1986 = vmatprep.subr.mxu0 0.0
  %1987 = vmatpush2.msra.mxu0 0.0
  %1988 = vmatprep.subr.mxu0 0.0
  %1989 = vmatpush2.msra.mxu0 0.0
  %1990 = vmatprep.subr.mxu0 0.0
  %1991 = vmatpush2.msra.mxu0 0.0
  %1992 = vmatprep.subr.mxu0 0.0
  %1993 = vmatpush2.msra.mxu0 0.0
  %1994 = vmatprep.subr.mxu0 0.0
  %1995 = vmatpush2.msra.mxu0 0.0
  %1996 = vmatprep.mubr.f32.mxu0 0.0
  %1997 = vmatmul.mubr.f32.gmra.mxu0 %v1930
  %v1998 = vpop.f32.mrf.mxu0
  %v1999 = vadd.f32 %v1927, %v1998
  %v2000 = vpop.f32.mrf.mxu0
  %v2001 = vadd.f32 %v1927, %v2000
  %2002 = vdwg.mxu0
  %2003 = vmatprep.subr.mxu0 0.0
  %2004 = vmatpush1.msra.mxu0 0.0
  %2005 = vmatprep.subr.mxu0 0.0
  %2006 = vmatpush1.msra.mxu0 0.0
  %2007 = vmatprep.subr.mxu0 0.0
  %2008 = vmatpush1.msra.mxu0 0.0
  %2009 = vmatprep.subr.mxu0 0.0
  %2010 = vmatpush1.msra.mxu0 0.0
  %2011 = vmatprep.subr.mxu0 0.0
  %2012 = vmatpush1.msra.mxu0 0.0
  %2013 = vmatprep.subr.mxu0 0.0
  %2014 = vmatpush1.msra.mxu0 0.0
  %2015 = vmatprep.subr.mxu0 0.0
  %2016 = vmatpush1.msra.mxu0 0.0
  %2017 = vmatprep.subr.mxu0 0.0
  %2018 = vmatpush1.msra.mxu0 0.0
  %2019 = vmatprep.subr.mxu0 0.0
  %2020 = vmatpush1.msra.mxu0 0.0
  %2021 = vmatprep.subr.mxu0 0.0
  %2022 = vmatpush1.msra.mxu0 0.0
  %2023 = vmatprep.subr.mxu0 0.0
  %2024 = vmatpush1.msra.mxu0 0.0
  %2025 = vmatprep.subr.mxu0 0.0
  %2026 = vmatpush1.msra.mxu0 0.0
  %2027 = vmatprep.subr.mxu0 0.0
  %2028 = vmatpush1.msra.mxu0 0.0
  %2029 = vmatprep.subr.mxu0 0.0
  %2030 = vmatpush1.msra.mxu0 0.0
  %2031 = vmatprep.subr.mxu0 %v1912
  %2032 = vmatpush1.msra.mxu0 %v1911
  %2033 = vmatprep.subr.mxu0 %v1904
  %2034 = vmatpush1.msra.mxu0 %v1903
  %2035 = vmatprep.subr.mxu0 0.0
  %2036 = vmatpush2.msra.mxu0 0.0
  %2037 = vmatprep.subr.mxu0 0.0
  %2038 = vmatpush2.msra.mxu0 0.0
  %2039 = vmatprep.subr.mxu0 0.0
  %2040 = vmatpush2.msra.mxu0 0.0
  %2041 = vmatprep.subr.mxu0 0.0
  %2042 = vmatpush2.msra.mxu0 0.0
  %2043 = vmatprep.subr.mxu0 0.0
  %2044 = vmatpush2.msra.mxu0 0.0
  %2045 = vmatprep.subr.mxu0 0.0
  %2046 = vmatpush2.msra.mxu0 0.0
  %2047 = vmatprep.subr.mxu0 0.0
  %2048 = vmatpush2.msra.mxu0 0.0
  %2049 = vmatprep.subr.mxu0 0.0
  %2050 = vmatpush2.msra.mxu0 0.0
  %2051 = vmatprep.subr.mxu0 0.0
  %2052 = vmatpush2.msra.mxu0 0.0
  %2053 = vmatprep.subr.mxu0 0.0
  %2054 = vmatpush2.msra.mxu0 0.0
  %2055 = vmatprep.subr.mxu0 0.0
  %2056 = vmatpush2.msra.mxu0 0.0
  %2057 = vmatprep.subr.mxu0 0.0
  %2058 = vmatpush2.msra.mxu0 0.0
  %2059 = vmatprep.subr.mxu0 0.0
  %2060 = vmatpush2.msra.mxu0 0.0
  %2061 = vmatprep.subr.mxu0 0.0
  %2062 = vmatpush2.msra.mxu0 0.0
  %2063 = vmatprep.subr.mxu0 0.0
  %2064 = vmatpush2.msra.mxu0 0.0
  %2065 = vmatprep.subr.mxu0 0.0
  %2066 = vmatpush2.msra.mxu0 0.0
  %2067 = vmatprep.mubr.f32.mxu0 0.0
  %2068 = vmatmul.mubr.f32.gmra.mxu0 %v1930
  %v2069 = vpop.f32.mrf.mxu0
  %v2070 = vadd.f32 %v1927, %v2069
  %v2071 = vpop.f32.mrf.mxu0
  %v2072 = vadd.f32 %v1927, %v2071
  %2073 = vdwg.mxu0
  %2074 = vmatprep.subr.mxu0 0.0
  %2075 = vmatpush1.msra.mxu0 0.0
  %2076 = vmatprep.subr.mxu0 0.0
  %2077 = vmatpush1.msra.mxu0 0.0
  %2078 = vmatprep.subr.mxu0 0.0
  %2079 = vmatpush1.msra.mxu0 0.0
  %2080 = vmatprep.subr.mxu0 0.0
  %2081 = vmatpush1.msra.mxu0 0.0
  %2082 = vmatprep.subr.mxu0 0.0
  %2083 = vmatpush1.msra.mxu0 0.0
  %2084 = vmatprep.subr.mxu0 0.0
  %2085 = vmatpush1.msra.mxu0 0.0
  %2086 = vmatprep.subr.mxu0 0.0
  %2087 = vmatpush1.msra.mxu0 0.0
  %2088 = vmatprep.subr.mxu0 0.0
  %2089 = vmatpush1.msra.mxu0 0.0
  %2090 = vmatprep.subr.mxu0 0.0
  %2091 = vmatpush1.msra.mxu0 0.0
  %2092 = vmatprep.subr.mxu0 0.0
  %2093 = vmatpush1.msra.mxu0 0.0
  %2094 = vmatprep.subr.mxu0 0.0
  %2095 = vmatpush1.msra.mxu0 0.0
  %2096 = vmatprep.subr.mxu0 0.0
  %2097 = vmatpush1.msra.mxu0 0.0
  %2098 = vmatprep.subr.mxu0 0.0
  %2099 = vmatpush1.msra.mxu0 0.0
  %2100 = vmatprep.subr.mxu0 0.0
  %2101 = vmatpush1.msra.mxu0 0.0
  %2102 = vmatprep.subr.mxu0 %v1914
  %2103 = vmatpush1.msra.mxu0 %v1913
  %2104 = vmatprep.subr.mxu0 %v1906
  %2105 = vmatpush1.msra.mxu0 %v1905
  %2106 = vmatprep.subr.mxu0 0.0
  %2107 = vmatpush2.msra.mxu0 0.0
  %2108 = vmatprep.subr.mxu0 0.0
  %2109 = vmatpush2.msra.mxu0 0.0
  %2110 = vmatprep.subr.mxu0 0.0
  %2111 = vmatpush2.msra.mxu0 0.0
  %2112 = vmatprep.subr.mxu0 0.0
  %2113 = vmatpush2.msra.mxu0 0.0
  %2114 = vmatprep.subr.mxu0 0.0
  %2115 = vmatpush2.msra.mxu0 0.0
  %2116 = vmatprep.subr.mxu0 0.0
  %2117 = vmatpush2.msra.mxu0 0.0
  %2118 = vmatprep.subr.mxu0 0.0
  %2119 = vmatpush2.msra.mxu0 0.0
  %2120 = vmatprep.subr.mxu0 0.0
  %2121 = vmatpush2.msra.mxu0 0.0
  %2122 = vmatprep.subr.mxu0 0.0
  %2123 = vmatpush2.msra.mxu0 0.0
  %2124 = vmatprep.subr.mxu0 0.0
  %2125 = vmatpush2.msra.mxu0 0.0
  %2126 = vmatprep.subr.mxu0 0.0
  %2127 = vmatpush2.msra.mxu0 0.0
  %2128 = vmatprep.subr.mxu0 0.0
  %2129 = vmatpush2.msra.mxu0 0.0
  %2130 = vmatprep.subr.mxu0 0.0
  %2131 = vmatpush2.msra.mxu0 0.0
  %2132 = vmatprep.subr.mxu0 0.0
  %2133 = vmatpush2.msra.mxu0 0.0
  %2134 = vmatprep.subr.mxu0 0.0
  %2135 = vmatpush2.msra.mxu0 0.0
  %2136 = vmatprep.subr.mxu0 0.0
  %2137 = vmatpush2.msra.mxu0 0.0
  %2138 = vmatprep.mubr.f32.mxu0 0.0
  %2139 = vmatmul.mubr.f32.gmra.mxu0 %v1930
  %v2140 = vpop.f32.mrf.mxu0
  %v2141 = vadd.f32 %v1927, %v2140
  %v2142 = vpop.f32.mrf.mxu0
  %v2143 = vadd.f32 %v1927, %v2142
  %2144 = vdwg.mxu0
  %2145 = vmatprep.subr.mxu0 0.0
  %2146 = vmatpush1.msra.mxu0 0.0
  %2147 = vmatprep.subr.mxu0 0.0
  %2148 = vmatpush1.msra.mxu0 0.0
  %2149 = vmatprep.subr.mxu0 0.0
  %2150 = vmatpush1.msra.mxu0 0.0
  %2151 = vmatprep.subr.mxu0 0.0
  %2152 = vmatpush1.msra.mxu0 0.0
  %2153 = vmatprep.subr.mxu0 0.0
  %2154 = vmatpush1.msra.mxu0 0.0
  %2155 = vmatprep.subr.mxu0 0.0
  %2156 = vmatpush1.msra.mxu0 0.0
  %2157 = vmatprep.subr.mxu0 0.0
  %2158 = vmatpush1.msra.mxu0 0.0
  %2159 = vmatprep.subr.mxu0 0.0
  %2160 = vmatpush1.msra.mxu0 0.0
  %2161 = vmatprep.subr.mxu0 0.0
  %2162 = vmatpush1.msra.mxu0 0.0
  %2163 = vmatprep.subr.mxu0 0.0
  %2164 = vmatpush1.msra.mxu0 0.0
  %2165 = vmatprep.subr.mxu0 0.0
  %2166 = vmatpush1.msra.mxu0 0.0
  %2167 = vmatprep.subr.mxu0 0.0
  %2168 = vmatpush1.msra.mxu0 0.0
  %2169 = vmatprep.subr.mxu0 0.0
  %2170 = vmatpush1.msra.mxu0 0.0
  %2171 = vmatprep.subr.mxu0 0.0
  %2172 = vmatpush1.msra.mxu0 0.0
  %2173 = vmatprep.subr.mxu0 %v1916
  %2174 = vmatpush1.msra.mxu0 %v1915
  %2175 = vmatprep.subr.mxu0 %v1908
  %2176 = vmatpush1.msra.mxu0 %v1907
  %2177 = vmatprep.subr.mxu0 0.0
  %2178 = vmatpush2.msra.mxu0 0.0
  %2179 = vmatprep.subr.mxu0 0.0
  %2180 = vmatpush2.msra.mxu0 0.0
  %2181 = vmatprep.subr.mxu0 0.0
  %2182 = vmatpush2.msra.mxu0 0.0
  %2183 = vmatprep.subr.mxu0 0.0
  %2184 = vmatpush2.msra.mxu0 0.0
  %2185 = vmatprep.subr.mxu0 0.0
  %2186 = vmatpush2.msra.mxu0 0.0
  %2187 = vmatprep.subr.mxu0 0.0
  %2188 = vmatpush2.msra.mxu0 0.0
  %2189 = vmatprep.subr.mxu0 0.0
  %2190 = vmatpush2.msra.mxu0 0.0
  %2191 = vmatprep.subr.mxu0 0.0
  %2192 = vmatpush2.msra.mxu0 0.0
  %2193 = vmatprep.subr.mxu0 0.0
  %2194 = vmatpush2.msra.mxu0 0.0
  %2195 = vmatprep.subr.mxu0 0.0
  %2196 = vmatpush2.msra.mxu0 0.0
  %2197 = vmatprep.subr.mxu0 0.0
  %2198 = vmatpush2.msra.mxu0 0.0
  %2199 = vmatprep.subr.mxu0 0.0
  %2200 = vmatpush2.msra.mxu0 0.0
  %2201 = vmatprep.subr.mxu0 0.0
  %2202 = vmatpush2.msra.mxu0 0.0
  %2203 = vmatprep.subr.mxu0 0.0
  %2204 = vmatpush2.msra.mxu0 0.0
  %2205 = vmatprep.subr.mxu0 0.0
  %2206 = vmatpush2.msra.mxu0 0.0
  %2207 = vmatprep.subr.mxu0 0.0
  %2208 = vmatpush2.msra.mxu0 0.0
  %2209 = vmatprep.mubr.f32.mxu0 0.0
  %2210 = vmatmul.mubr.f32.gmra.mxu0 %v1930
  %v2211 = vpop.f32.mrf.mxu0
  %v2212 = vadd.f32 %v1927, %v2211
  %v2213 = vpop.f32.mrf.mxu0
  %v2214 = vadd.f32 %v1927, %v2213
  %2215 = vdwg.mxu0
  %v2216 = vmul.f32 %v1999, 0.5
  %v2217 = vmul.f32 %v2001, 0.5
  %v2218 = vmul.f32 %v2070, 0.5
  %v2219 = vmul.f32 %v2072, 0.5
  %v2220 = vmul.f32 %v2141, 0.5
  %v2221 = vmul.f32 %v2143, 0.5
  %v2222 = vmul.f32 %v2212, 0.5
  %v2223 = vmul.f32 %v2214, 0.5
  %v2224 = vtanh.pop %v2216
  %v2225 = vtanh.pop %v2217
  %v2226 = vtanh.pop %v2218
  %v2227 = vtanh.pop %v2219
  %v2228 = vtanh.pop %v2220
  %v2229 = vtanh.pop %v2221
  %v2230 = vtanh.pop %v2222
  %v2231 = vtanh.pop %v2223
  %v2232 = vmul.f32 %v2224, 0.5
  %v2233 = vmul.f32 %v2225, 0.5
  %v2234 = vmul.f32 %v2226, 0.5
  %v2235 = vmul.f32 %v2227, 0.5
  %v2236 = vmul.f32 %v2228, 0.5
  %v2237 = vmul.f32 %v2229, 0.5
  %v2238 = vmul.f32 %v2230, 0.5
  %v2239 = vmul.f32 %v2231, 0.5
  %v2240 = vadd.f32 %v2232, 0.5
  %v2241 = vadd.f32 %v2233, 0.5
  %v2242 = vadd.f32 %v2234, 0.5
  %v2243 = vadd.f32 %v2235, 0.5
  %v2244 = vadd.f32 %v2236, 0.5
  %v2245 = vadd.f32 %v2237, 0.5
  %v2246 = vadd.f32 %v2238, 0.5
  %v2247 = vadd.f32 %v2239, 0.5
  %v2256 = vcombine.low %v2240, %v2241
  %v2257 = vcombine.low %v2242, %v2243
  %v2258 = vcombine.low %v2244, %v2245
  %v2259 = vcombine.low %v2246, %v2247
  %v2261 = vunpack.c.l.s4 1966171168
  %v2262 = vunpack.c.0.s8 %v2261
  %v2263 = vlaneseq
  %v2264 = vshrl.u32 %v2263, 7
  %v2265 = vsub.s32 %v2262, %v2264
  %v2266 = vrot.slane %v2256, %v2265
  %v2268 = vunpack.c.l.s4 1966171168
  %v2269 = vunpack.c.0.s8 %v2268
  %v2270 = vlaneseq
  %v2271 = vshrl.u32 %v2270, 7
  %v2272 = vsub.s32 %v2269, %v2271
  %v2273 = vrot.slane %v2257, %v2272
  %v2275 = vunpack.c.l.s4 1966171168
  %v2276 = vunpack.c.0.s8 %v2275
  %v2277 = vlaneseq
  %v2278 = vshrl.u32 %v2277, 7
  %v2279 = vsub.s32 %v2276, %v2278
  %v2280 = vrot.slane %v2258, %v2279
  %v2282 = vunpack.c.l.s4 1966171168
  %v2283 = vunpack.c.0.s8 %v2282
  %v2284 = vlaneseq
  %v2285 = vshrl.u32 %v2284, 7
  %v2286 = vsub.s32 %v2283, %v2285
  %v2287 = vrot.slane %v2259, %v2286
  %v2288 = vcombine.low %v2266, %v2273
  %v2289 = vcombine.low %v2280, %v2287
  %v2291 = vunpack.c.l.s4 1966171168
  %v2292 = vunpack.c.0.s8 %v2291
  %v2293 = vlaneseq
  %v2294 = vshrl.u32 %v2293, 7
  %v2295 = vsub.s32 %v2292, %v2294
  %v2296 = vrot.slane %v2288, %v2295
  %v2298 = vunpack.c.l.s4 1966171168
  %v2299 = vunpack.c.0.s8 %v2298
  %v2300 = vlaneseq
  %v2301 = vshrl.u32 %v2300, 7
  %v2302 = vsub.s32 %v2299, %v2301
  %v2303 = vrot.slane %v2289, %v2302
  %v2304 = vcombine.low %v2296, %v2303
  %2306 = vst [vmem:[%s9] sm:$0xff] %v2304
  // Predicated region
  $region38: #{mlp_forward.1} parent=0 // pred_check
    _
  $region39: #{mlp_forward.1} parent=0 // pred_check_branch
    %2308 = sbr.rel (0) target = $region41
  $region40: #{mlp_forward.1} parent=0 // pred_region
    _
  $region41: #{mlp_forward.1} parent=0 // pred_fallthru
    _
  // Predicated region
  $region42: #{mlp_forward.1} parent=0 // pred_check
    _
  $region43: #{mlp_forward.1} parent=0 // pred_check_branch
    %2310 = sbr.rel (0) target = $region45
  $region44: #{mlp_forward.1} parent=0 // pred_region
    _
  $region45: #{mlp_forward.1} parent=0 // pred_fallthru
    _

</llo_original>
